<compile_context>
chip_gen: v5e
topology: v5e:2x2
jax: 0.10.0
libtpu: 0.0.40
codegen_flags: <defaults>
</compile_context>

<pallas_src>
import functools
import math

import jax
import jax.numpy as jnp
import numpy as np
from jax.experimental import pallas as pl
from jax.experimental.pallas import tpu as pltpu

# ---------------- small synthetic config ----------------
B = 2
S = 8
HIDDEN = 32
INTER = 64
NUM_LAYERS = 2
NUM_HEADS = 4
NUM_KV_HEADS = 2
HEAD_DIM = 16
EPS = 1e-6
ROPE_THETA = 10000.0
MASK_VALUE = -1e9


def _rmsnorm(x, w, eps):
    # x: (..., H), w: (1, H)  -> Gemma RMSNorm with (1 + weight) scale
    var = jnp.mean(x * x, axis=-1, keepdims=True)
    return x * jax.lax.rsqrt(var + eps) * (1.0 + w)


# ---------------- fused Pallas kernel ----------------
def gemma_fused_kernel(x_ref, mask_ref, cos_ref, sin_ref,
                       ln1_ref, qkv_ref, ow_ref, ln2_ref, gu_ref, dw_ref,
                       fnorm_ref, o_ref, *,
                       num_heads, num_kv_heads, head_dim, inter, eps,
                       embed_scale):
    layer = pl.program_id(1)
    n_layers = pl.num_programs(1)

    # Layer 0: seed the resident activation (carried in o_ref across the layer
    # axis) with the embeddings, fused with the sqrt(hidden_size) normalizer.
    @pl.when(layer == 0)
    def _():
        o_ref[...] = x_ref[...] * embed_scale

    x = o_ref[...]        # (S, H) resident activation for this batch element
    mask = mask_ref[...]  # (S, S) additive causal mask
    cos = cos_ref[...]    # (S, head_dim)
    sin_s = sin_ref[...]  # (S, head_dim), first half pre-negated (sign-folded)

    seq = x.shape[0]
    half = head_dim // 2
    q_w = num_heads * head_dim
    kv_w = num_kv_heads * head_dim
    n_rep = num_heads // num_kv_heads
    inv_sqrt_d = 1.0 / math.sqrt(head_dim)

    # ---- attention block ----
    normed = _rmsnorm(x, ln1_ref[...], eps)
    # fused q/k/v projection: one 128-lane-wide MXU pass
    qkv = jnp.dot(normed, qkv_ref[...], preferred_element_type=jnp.float32)
    q = qkv[:, :q_w]
    k = qkv[:, q_w:q_w + kv_w]
    v = qkv[:, q_w + kv_w:]

    # head-major layouts once: (heads, S, head_dim)
    q3 = q.reshape(seq, num_heads, head_dim).transpose(1, 0, 2)
    k3 = k.reshape(seq, num_kv_heads, head_dim).transpose(1, 0, 2)
    v3 = v.reshape(seq, num_kv_heads, head_dim).transpose(1, 0, 2)

    def rope(t):
        # rotate_half via a single half-swap; the sign lives in sin_s already.
        rot = jnp.concatenate([t[..., half:], t[..., :half]], axis=-1)
        return t * cos[None] + rot * sin_s[None]

    q3 = rope(q3)
    k3 = rope(k3)

    # GQA: repeat kv heads to the full head count (static broadcast + reshape)
    if n_rep > 1:
        k3 = jnp.broadcast_to(
            k3[:, None], (num_kv_heads, n_rep, seq, head_dim)
        ).reshape(num_heads, seq, head_dim)
        v3 = jnp.broadcast_to(
            v3[:, None], (num_kv_heads, n_rep, seq, head_dim)
        ).reshape(num_heads, seq, head_dim)

    # batched-over-heads attention: (NH, S, S) scores, (NH, S, HD) outputs
    scores = jax.lax.dot_general(
        q3, k3, (((2,), (2,)), ((0,), (0,))),
        preferred_element_type=jnp.float32) * inv_sqrt_d + mask[None]
    m = jnp.max(scores, axis=-1, keepdims=True)
    e = jnp.exp(scores - m)
    denom = jnp.sum(e, axis=-1, keepdims=True)
    # exact reciprocal keeps the 1e-4 parity check; approx=True is the prod choice
    probs = e * pl.reciprocal(denom)
    attn3 = jax.lax.dot_general(
        probs, v3, (((2,), (1,)), ((0,), (0,))),
        preferred_element_type=jnp.float32)
    attn = attn3.transpose(1, 0, 2).reshape(seq, num_heads * head_dim)
    attn_out = jnp.dot(attn, ow_ref[...], preferred_element_type=jnp.float32)

    h1 = x + attn_out

    # ---- MLP block (fused gate/up projection) ----
    normed2 = _rmsnorm(h1, ln2_ref[...], eps)
    gu = jnp.dot(normed2, gu_ref[...], preferred_element_type=jnp.float32)
    gate = jax.nn.gelu(gu[:, :inter], approximate=True)
    mlp = jnp.dot(gate * gu[:, inter:], dw_ref[...],
                  preferred_element_type=jnp.float32)
    h2 = h1 + mlp

    # single store per layer: carry, or fused final model RMSNorm on last layer
    @pl.when(layer < n_layers - 1)
    def _():
        o_ref[...] = h2

    @pl.when(layer == n_layers - 1)
    def _():
        o_ref[...] = _rmsnorm(h2, fnorm_ref[...], eps)


# ---------------- glue / wrapper ----------------
def rope_cos_sin(position_ids, head_dim, theta, dtype):
    # GemmaRotaryEmbedding: tiny outer product + trig (plain-JAX glue).
    inv_freq = 1.0 / (theta ** (jnp.arange(0, head_dim, 2, dtype=jnp.float32) / head_dim))
    freqs = position_ids[..., None].astype(jnp.float32) * inv_freq[None, None, :]
    emb = jnp.concatenate([freqs, freqs], axis=-1)  # (B, S, head_dim)
    return jnp.cos(emb).astype(dtype), jnp.sin(emb).astype(dtype)


def pack_params(layer_params, final_norm):
    # Stack per-layer weights along a leading L axis; fuse q/k/v and gate/up.
    return dict(
        ln1=jnp.stack([p["ln1"] for p in layer_params]),                      # (L, 1, H)
        qkv=jnp.stack([jnp.concatenate([p["qw"], p["kw"], p["vw"]], axis=1)
                       for p in layer_params]),                               # (L, H, 128)
        ow=jnp.stack([p["ow"] for p in layer_params]),                        # (L, NH*HD, H)
        ln2=jnp.stack([p["ln2"] for p in layer_params]),                      # (L, 1, H)
        gu=jnp.stack([jnp.concatenate([p["gw"], p["uw"]], axis=1)
                      for p in layer_params]),                                # (L, H, 2*INTER)
        dw=jnp.stack([p["dw"] for p in layer_params]),                        # (L, INTER, H)
        fnorm=final_norm,                                                     # (1, H)
    )


def gemma_model_forward(inputs_embeds, attention_mask, position_ids, packed):
    b, s, h = inputs_embeds.shape
    qkv_w = NUM_HEADS * HEAD_DIM + 2 * NUM_KV_HEADS * HEAD_DIM
    half = HEAD_DIM // 2

    cos, sin = rope_cos_sin(position_ids, HEAD_DIM, ROPE_THETA, inputs_embeds.dtype)
    # sign-folded sin: rotate_half becomes a plain half-swap inside the kernel
    sin_signed = jnp.concatenate([-sin[..., :half], sin[..., half:]], axis=-1)

    kernel = functools.partial(
        gemma_fused_kernel,
        num_heads=NUM_HEADS, num_kv_heads=NUM_KV_HEADS, head_dim=HEAD_DIM,
        inter=INTER, eps=EPS, embed_scale=float(h) ** 0.5)

    per_batch = lambda bb, ll: (bb, 0, 0)   # fixed across the layer axis
    per_layer = lambda bb, ll: (ll, 0, 0)   # fixed across the batch axis
    fixed2 = lambda bb, ll: (0, 0)

    out = pl.pallas_call(
        kernel,
        out_shape=jax.ShapeDtypeStruct((b, s, h), jnp.float32),
        grid=(b, NUM_LAYERS),               # batch "parallel" (megacore), layers "arbitrary"
        in_specs=[
            pl.BlockSpec((None, s, h), per_batch),                      # embeds
            pl.BlockSpec((None, s, s), per_batch),                      # per-batch additive mask
            pl.BlockSpec((None, s, HEAD_DIM), per_batch),               # cos
            pl.BlockSpec((None, s, HEAD_DIM), per_batch),               # sin (sign-folded)
            pl.BlockSpec((None, 1, h), per_layer),                      # ln1
            pl.BlockSpec((None, h, qkv_w), per_layer),                  # fused qkv
            pl.BlockSpec((None, NUM_HEADS * HEAD_DIM, h), per_layer),   # o_proj
            pl.BlockSpec((None, 1, h), per_layer),                      # ln2
            pl.BlockSpec((None, h, 2 * INTER), per_layer),              # fused gate/up
            pl.BlockSpec((None, INTER, h), per_layer),                  # down_proj
            pl.BlockSpec((1, h), fixed2),                               # final norm
        ],
        # output block fixed across the layer axis -> VMEM-resident activation carry
        out_specs=pl.BlockSpec((None, s, h), per_batch),
        compiler_params=pltpu.CompilerParams(
            dimension_semantics=("parallel", "arbitrary")),
    )(inputs_embeds, attention_mask, cos, sin_signed,
      packed["ln1"], packed["qkv"], packed["ow"],
      packed["ln2"], packed["gu"], packed["dw"], packed["fnorm"])
    return out


# ---------------- pure-JAX reference ----------------
def reference_forward(x, mask, pos_ids, params):
    h = x * (float(HIDDEN) ** 0.5)
    cos, sin = rope_cos_sin(pos_ids, HEAD_DIM, ROPE_THETA, x.dtype)
    for p in params["layers"]:
        res = h
        n = _rmsnorm(h, p["ln1"], EPS)
        q = (n @ p["qw"]).reshape(B, S, NUM_HEADS, HEAD_DIM).transpose(0, 2, 1, 3)
        k = (n @ p["kw"]).reshape(B, S, NUM_KV_HEADS, HEAD_DIM).transpose(0, 2, 1, 3)
        v = (n @ p["vw"]).reshape(B, S, NUM_KV_HEADS, HEAD_DIM).transpose(0, 2, 1, 3)

        def rope(t):
            t1 = t[..., :HEAD_DIM // 2]
            t2 = t[..., HEAD_DIM // 2:]
            rot = jnp.concatenate([-t2, t1], axis=-1)
            return t * cos[:, None] + rot * sin[:, None]

        q, k = rope(q), rope(k)
        n_rep = NUM_HEADS // NUM_KV_HEADS
        k = jnp.repeat(k, n_rep, axis=1)
        v = jnp.repeat(v, n_rep, axis=1)
        scores = jnp.einsum("bhqd,bhkd->bhqk", q, k) / math.sqrt(HEAD_DIM)
        probs = jax.nn.softmax(scores + mask[:, None], axis=-1)
        attn = jnp.einsum("bhqk,bhkd->bhqd", probs, v)
        attn = attn.transpose(0, 2, 1, 3).reshape(B, S, NUM_HEADS * HEAD_DIM)
        h = res + attn @ p["ow"]
        res = h
        n2 = _rmsnorm(h, p["ln2"], EPS)
        gate = jax.nn.gelu(n2 @ p["gw"], approximate=True)
        h = res + (gate * (n2 @ p["uw"])) @ p["dw"]
    return _rmsnorm(h, params["final_norm"], EPS)


# ---------------- parameter init ----------------
def init_params(key):
    def w(k, shape, scale=0.05):
        return jax.random.normal(k, shape, jnp.float32) * scale

    layers = []
    keys = jax.random.split(key, NUM_LAYERS * 9 + 1)
    for i in range(NUM_LAYERS):
        ks = keys[i * 9:(i + 1) * 9]
        layers.append(dict(
            ln1=w(ks[0], (1, HIDDEN), 0.1),
            qw=w(ks[1], (HIDDEN, NUM_HEADS * HEAD_DIM)),
            kw=w(ks[2], (HIDDEN, NUM_KV_HEADS * HEAD_DIM)),
            vw=w(ks[3], (HIDDEN, NUM_KV_HEADS * HEAD_DIM)),
            ow=w(ks[4], (NUM_HEADS * HEAD_DIM, HIDDEN)),
            ln2=w(ks[5], (1, HIDDEN), 0.1),
            gw=w(ks[6], (HIDDEN, INTER)),
            uw=w(ks[7], (HIDDEN, INTER)),
            dw=w(ks[8], (INTER, HIDDEN)),
        ))
    return dict(layers=layers, final_norm=w(keys[-1], (1, HIDDEN), 0.1))


if __name__ == "__main__":
    root = jax.random.PRNGKey(0)
    k_emb, k_par = jax.random.split(root)

    inputs_embeds = jax.random.normal(k_emb, (B, S, HIDDEN), jnp.float32)
    position_ids = jnp.broadcast_to(jnp.arange(S, dtype=jnp.int32), (B, S))
    causal = jnp.where(jnp.tril(jnp.ones((S, S), dtype=bool)), 0.0, MASK_VALUE)
    attention_mask = jnp.broadcast_to(causal, (B, S, S)).astype(jnp.float32)

    params = init_params(k_par)
    packed = pack_params(params["layers"], params["final_norm"])

    out = gemma_model_forward(inputs_embeds, attention_mask, position_ids, packed)
    out = jax.block_until_ready(out)

    ref = reference_forward(inputs_embeds, attention_mask, position_ids, params)
    np.testing.assert_allclose(np.asarray(out), np.asarray(ref), rtol=1e-4, atol=1e-4)

    print("KERNEL_OK")
</pallas_src>

<mosaic_0001>
module attributes {stable_mosaic.version = 11 : i64} {
  func.func @gemma_fused_kernel(%arg0: i32, %arg1: i32, %arg2: memref<1x8x32xf32, #tpu.memory_space<vmem>>, %arg3: memref<1x8x8xf32, #tpu.memory_space<vmem>>, %arg4: memref<1x8x16xf32, #tpu.memory_space<vmem>>, %arg5: memref<1x8x16xf32, #tpu.memory_space<vmem>>, %arg6: memref<1x1x32xf32, #tpu.memory_space<vmem>>, %arg7: memref<1x32x128xf32, #tpu.memory_space<vmem>>, %arg8: memref<1x64x32xf32, #tpu.memory_space<vmem>>, %arg9: memref<1x1x32xf32, #tpu.memory_space<vmem>>, %arg10: memref<1x32x128xf32, #tpu.memory_space<vmem>>, %arg11: memref<1x64x32xf32, #tpu.memory_space<vmem>>, %arg12: memref<1x32xf32, #tpu.memory_space<vmem>>, %arg13: memref<1x8x32xf32, #tpu.memory_space<vmem>>) attributes {dimension_semantics = [#tpu.dimension_semantics<parallel>, #tpu.dimension_semantics<arbitrary>], iteration_bounds = array<i64: 2, 2>, scalar_prefetch = 0 : i64, scratch_operands = 0 : i64, tpu.core_type = #tpu.core_type<tc>, window_params = [{transform_indices = @transform_0, window_bounds = array<i64: 1, 8, 32>}, {transform_indices = @transform_1, window_bounds = array<i64: 1, 8, 8>}, {transform_indices = @transform_2, window_bounds = array<i64: 1, 8, 16>}, {transform_indices = @transform_3, window_bounds = array<i64: 1, 8, 16>}, {transform_indices = @transform_4, window_bounds = array<i64: 1, 1, 32>}, {transform_indices = @transform_5, window_bounds = array<i64: 1, 32, 128>}, {transform_indices = @transform_6, window_bounds = array<i64: 1, 64, 32>}, {transform_indices = @transform_7, window_bounds = array<i64: 1, 1, 32>}, {transform_indices = @transform_8, window_bounds = array<i64: 1, 32, 128>}, {transform_indices = @transform_9, window_bounds = array<i64: 1, 64, 32>}, {pipeline_mode = #tpu.pipeline_mode<synchronous>, transform_indices = @transform_10, window_bounds = array<i64: 1, 32>}, {transform_indices = @transform_11, window_bounds = array<i64: 1, 8, 32>}]} {
    %c0_i32 = arith.constant 0 : i32
    %0 = arith.cmpi eq, %arg1, %c0_i32 : i32
    %1 = arith.extui %0 : i1 to i32
    %c0_i32_0 = arith.constant 0 : i32
    %2 = arith.cmpi ne, %1, %c0_i32_0 : i32
    scf.if %2 {
      %c0_53 = arith.constant 0 : index
      %c0_54 = arith.constant 0 : index
      %c0_55 = arith.constant 0 : index
      %135 = vector.load %arg2[%c0_53, %c0_54, %c0_55] : memref<1x8x32xf32, #tpu.memory_space<vmem>>, vector<1x8x32xf32>
      %136 = vector.shape_cast %135 : vector<1x8x32xf32> to vector<8x32xf32>
      %cst_56 = arith.constant 5.65685415 : f32
      %137 = vector.broadcast %cst_56 : f32 to vector<8x32xf32>
      %138 = arith.mulf %136, %137 : vector<8x32xf32>
      %c0_57 = arith.constant 0 : index
      %c0_58 = arith.constant 0 : index
      %c0_59 = arith.constant 0 : index
      %139 = vector.load %arg13[%c0_57, %c0_58, %c0_59] : memref<1x8x32xf32, #tpu.memory_space<vmem>>, vector<1x8x32xf32>
      %140 = vector.shape_cast %139 : vector<1x8x32xf32> to vector<8x32xf32>
      %141 = vector.shape_cast %138 : vector<8x32xf32> to vector<1x8x32xf32>
      tpu.vector_store %arg13[%c0_57, %c0_58, %c0_59], %141 {strides = array<i32>} : memref<1x8x32xf32, #tpu.memory_space<vmem>>, vector<1x8x32xf32>,
    } else {
    }
    %c0 = arith.constant 0 : index
    %c0_1 = arith.constant 0 : index
    %c0_2 = arith.constant 0 : index
    %3 = vector.load %arg13[%c0, %c0_1, %c0_2] : memref<1x8x32xf32, #tpu.memory_space<vmem>>, vector<1x8x32xf32>
    %4 = vector.shape_cast %3 : vector<1x8x32xf32> to vector<8x32xf32>
    %c0_3 = arith.constant 0 : index
    %c0_4 = arith.constant 0 : index
    %c0_5 = arith.constant 0 : index
    %5 = vector.load %arg3[%c0_3, %c0_4, %c0_5] : memref<1x8x8xf32, #tpu.memory_space<vmem>>, vector<1x8x8xf32>
    %6 = vector.shape_cast %5 : vector<1x8x8xf32> to vector<8x8xf32>
    %c0_6 = arith.constant 0 : index
    %c0_7 = arith.constant 0 : index
    %c0_8 = arith.constant 0 : index
    %7 = vector.load %arg4[%c0_6, %c0_7, %c0_8] : memref<1x8x16xf32, #tpu.memory_space<vmem>>, vector<1x8x16xf32>
    %8 = vector.shape_cast %7 : vector<1x8x16xf32> to vector<8x16xf32>
    %c0_9 = arith.constant 0 : index
    %c0_10 = arith.constant 0 : index
    %c0_11 = arith.constant 0 : index
    %9 = vector.load %arg5[%c0_9, %c0_10, %c0_11] : memref<1x8x16xf32, #tpu.memory_space<vmem>>, vector<1x8x16xf32>
    %10 = vector.shape_cast %9 : vector<1x8x16xf32> to vector<8x16xf32>
    %c0_12 = arith.constant 0 : index
    %c0_13 = arith.constant 0 : index
    %c0_14 = arith.constant 0 : index
    %11 = vector.load %arg6[%c0_12, %c0_13, %c0_14] : memref<1x1x32xf32, #tpu.memory_space<vmem>>, vector<1x1x32xf32>
    %12 = vector.shape_cast %11 : vector<1x1x32xf32> to vector<1x32xf32>
    %13 = arith.mulf %4, %4 : vector<8x32xf32>
    %cst = arith.constant dense<0.000000e+00> : vector<8xf32>
    %14 = vector.multi_reduction <add>, %13, %cst [1] : vector<8x32xf32> to vector<8xf32>
    %15 = vector.shape_cast %14 : vector<8xf32> to vector<8x1xf32>
    %cst_15 = arith.constant 3.200000e+01 : f32
    %16 = vector.broadcast %cst_15 : f32 to vector<8x1xf32>
    %17 = arith.divf %15, %16 : vector<8x1xf32>
    %cst_16 = arith.constant 9.99999997E-7 : f32
    %18 = vector.broadcast %cst_16 : f32 to vector<8x1xf32>
    %19 = arith.addf %17, %18 : vector<8x1xf32>
    %20 = math.rsqrt %19 : vector<8x1xf32>
    %21 = vector.broadcast %20 : vector<8x1xf32> to vector<8x32xf32>
    %22 = arith.mulf %4, %21 : vector<8x32xf32>
    %cst_17 = arith.constant 1.000000e+00 : f32
    %23 = vector.broadcast %cst_17 : f32 to vector<1x32xf32>
    %24 = arith.addf %23, %12 : vector<1x32xf32>
    %25 = vector.broadcast %24 : vector<1x32xf32> to vector<8x32xf32>
    %26 = arith.mulf %22, %25 : vector<8x32xf32>
    %c0_18 = arith.constant 0 : index
    %c0_19 = arith.constant 0 : index
    %c0_20 = arith.constant 0 : index
    %27 = vector.load %arg7[%c0_18, %c0_19, %c0_20] : memref<1x32x128xf32, #tpu.memory_space<vmem>>, vector<1x32x128xf32>
    %28 = vector.shape_cast %27 : vector<1x32x128xf32> to vector<32x128xf32>
    %cst_21 = arith.constant dense<0.000000e+00> : vector<8x128xf32>
    %29 = tpu.matmul %26, %28, %cst_21 {dimension_numbers = #tpu.dot_dimension_numbers<[1], [0], [0], [1], [0, 0, 1, 1], [], []>} : vector<8x32xf32>, vector<32x128xf32>, vector<8x128xf32> -> vector<8x128xf32>
    %30 = vector.extract_strided_slice %29 {offsets = [0, 0], sizes = [8, 64], strides = [1, 1]} : vector<8x128xf32> to vector<8x64xf32>
    %31 = vector.extract_strided_slice %29 {offsets = [0, 64], sizes = [8, 32], strides = [1, 1]} : vector<8x128xf32> to vector<8x32xf32>
    %32 = vector.extract_strided_slice %29 {offsets = [0, 96], sizes = [8, 32], strides = [1, 1]} : vector<8x128xf32> to vector<8x32xf32>
    %33 = vector.shape_cast %30 : vector<8x64xf32> to vector<8x4x16xf32>
    %34 = tpu.transpose %33, [1, 0, 2] : vector<8x4x16xf32> -> vector<4x8x16xf32>
    %35 = vector.shape_cast %31 : vector<8x32xf32> to vector<8x2x16xf32>
    %36 = tpu.transpose %35, [1, 0, 2] : vector<8x2x16xf32> -> vector<2x8x16xf32>
    %37 = vector.shape_cast %32 : vector<8x32xf32> to vector<8x2x16xf32>
    %38 = tpu.transpose %37, [1, 0, 2] : vector<8x2x16xf32> -> vector<2x8x16xf32>
    %39 = vector.extract_strided_slice %34 {offsets = [0, 0, 8], sizes = [4, 8, 8], strides = [1, 1, 1]} : vector<4x8x16xf32> to vector<4x8x8xf32>
    %40 = vector.extract_strided_slice %34 {offsets = [0, 0, 0], sizes = [4, 8, 8], strides = [1, 1, 1]} : vector<4x8x16xf32> to vector<4x8x8xf32>
    %41 = tpu.concatenate %39, %40 in 2 : vector<4x8x8xf32>, vector<4x8x8xf32> -> vector<4x8x16xf32>
    %42 = vector.shape_cast %8 : vector<8x16xf32> to vector<1x8x16xf32>
    %43 = vector.broadcast %42 : vector<1x8x16xf32> to vector<4x8x16xf32>
    %44 = arith.mulf %34, %43 : vector<4x8x16xf32>
    %45 = vector.shape_cast %10 : vector<8x16xf32> to vector<1x8x16xf32>
    %46 = vector.broadcast %45 : vector<1x8x16xf32> to vector<4x8x16xf32>
    %47 = arith.mulf %41, %46 : vector<4x8x16xf32>
    %48 = arith.addf %44, %47 : vector<4x8x16xf32>
    %49 = vector.extract_strided_slice %36 {offsets = [0, 0, 8], sizes = [2, 8, 8], strides = [1, 1, 1]} : vector<2x8x16xf32> to vector<2x8x8xf32>
    %50 = vector.extract_strided_slice %36 {offsets = [0, 0, 0], sizes = [2, 8, 8], strides = [1, 1, 1]} : vector<2x8x16xf32> to vector<2x8x8xf32>
    %51 = tpu.concatenate %49, %50 in 2 : vector<2x8x8xf32>, vector<2x8x8xf32> -> vector<2x8x16xf32>
    %52 = vector.shape_cast %8 : vector<8x16xf32> to vector<1x8x16xf32>
    %53 = vector.broadcast %52 : vector<1x8x16xf32> to vector<2x8x16xf32>
    %54 = arith.mulf %36, %53 : vector<2x8x16xf32>
    %55 = vector.shape_cast %10 : vector<8x16xf32> to vector<1x8x16xf32>
    %56 = vector.broadcast %55 : vector<1x8x16xf32> to vector<2x8x16xf32>
    %57 = arith.mulf %51, %56 : vector<2x8x16xf32>
    %58 = arith.addf %54, %57 : vector<2x8x16xf32>
    %59 = vector.shape_cast %58 : vector<2x8x16xf32> to vector<2x1x8x16xf32>
    %60 = vector.shape_cast %59 : vector<2x1x8x16xf32> to vector<2x1x8x16xf32>
    %61 = vector.broadcast %60 : vector<2x1x8x16xf32> to vector<2x2x8x16xf32>
    %62 = vector.shape_cast %61 : vector<2x2x8x16xf32> to vector<4x8x16xf32>
    %63 = vector.shape_cast %38 : vector<2x8x16xf32> to vector<2x1x8x16xf32>
    %64 = vector.shape_cast %63 : vector<2x1x8x16xf32> to vector<2x1x8x16xf32>
    %65 = vector.broadcast %64 : vector<2x1x8x16xf32> to vector<2x2x8x16xf32>
    %66 = vector.shape_cast %65 : vector<2x2x8x16xf32> to vector<4x8x16xf32>
    %cst_22 = arith.constant dense<0.000000e+00> : vector<4x8x8xf32>
    %67 = tpu.matmul %48, %62, %cst_22 {dimension_numbers = #tpu.dot_dimension_numbers<[2], [2], [1], [1], [0, 0, 0, 1, 1, 1], [0], [0]>} : vector<4x8x16xf32>, vector<4x8x16xf32>, vector<4x8x8xf32> -> vector<4x8x8xf32>
    %cst_23 = arith.constant 2.500000e-01 : f32
    %68 = vector.broadcast %cst_23 : f32 to vector<4x8x8xf32>
    %69 = arith.mulf %67, %68 : vector<4x8x8xf32>
    %70 = vector.shape_cast %6 : vector<8x8xf32> to vector<1x8x8xf32>
    %71 = vector.broadcast %70 : vector<1x8x8xf32> to vector<4x8x8xf32>
    %72 = arith.addf %69, %71 : vector<4x8x8xf32>
    %cst_24 = arith.constant dense<0xFF800000> : vector<4x8xf32>
    %73 = vector.multi_reduction <maximumf>, %72, %cst_24 [2] : vector<4x8x8xf32> to vector<4x8xf32>
    %74 = vector.shape_cast %73 : vector<4x8xf32> to vector<4x8x1xf32>
    %75 = vector.broadcast %74 : vector<4x8x1xf32> to vector<4x8x8xf32>
    %76 = arith.subf %72, %75 : vector<4x8x8xf32>
    %77 = math.exp %76 : vector<4x8x8xf32>
    %cst_25 = arith.constant dense<0.000000e+00> : vector<4x8xf32>
    %78 = vector.multi_reduction <add>, %77, %cst_25 [2] : vector<4x8x8xf32> to vector<4x8xf32>
    %79 = vector.shape_cast %78 : vector<4x8xf32> to vector<4x8x1xf32>
    %80 = tpu.reciprocal %79 : vector<4x8x1xf32> -> vector<4x8x1xf32>
    %81 = vector.broadcast %80 : vector<4x8x1xf32> to vector<4x8x8xf32>
    %82 = arith.mulf %77, %81 : vector<4x8x8xf32>
    %cst_26 = arith.constant dense<0.000000e+00> : vector<4x8x16xf32>
    %83 = tpu.matmul %82, %66, %cst_26 {dimension_numbers = #tpu.dot_dimension_numbers<[2], [1], [1], [2], [0, 0, 0, 1, 1, 2], [0], [0]>} : vector<4x8x8xf32>, vector<4x8x16xf32>, vector<4x8x16xf32> -> vector<4x8x16xf32>
    %84 = tpu.transpose %83, [1, 0, 2] : vector<4x8x16xf32> -> vector<8x4x16xf32>
    %85 = vector.shape_cast %84 : vector<8x4x16xf32> to vector<8x64xf32>
    %c0_27 = arith.constant 0 : index
    %c0_28 = arith.constant 0 : index
    %c0_29 = arith.constant 0 : index
    %86 = vector.load %arg8[%c0_27, %c0_28, %c0_29] : memref<1x64x32xf32, #tpu.memory_space<vmem>>, vector<1x64x32xf32>
    %87 = vector.shape_cast %86 : vector<1x64x32xf32> to vector<64x32xf32>
    %cst_30 = arith.constant dense<0.000000e+00> : vector<8x32xf32>
    %88 = tpu.matmul %85, %87, %cst_30 {dimension_numbers = #tpu.dot_dimension_numbers<[1], [0], [0], [1], [0, 0, 1, 1], [], []>} : vector<8x64xf32>, vector<64x32xf32>, vector<8x32xf32> -> vector<8x32xf32>
    %89 = arith.addf %4, %88 : vector<8x32xf32>
    %c0_31 = arith.constant 0 : index
    %c0_32 = arith.constant 0 : index
    %c0_33 = arith.constant 0 : index
    %90 = vector.load %arg9[%c0_31, %c0_32, %c0_33] : memref<1x1x32xf32, #tpu.memory_space<vmem>>, vector<1x1x32xf32>
    %91 = vector.shape_cast %90 : vector<1x1x32xf32> to vector<1x32xf32>
    %92 = arith.mulf %89, %89 : vector<8x32xf32>
    %cst_34 = arith.constant dense<0.000000e+00> : vector<8xf32>
    %93 = vector.multi_reduction <add>, %92, %cst_34 [1] : vector<8x32xf32> to vector<8xf32>
    %94 = vector.shape_cast %93 : vector<8xf32> to vector<8x1xf32>
    %cst_35 = arith.constant 3.200000e+01 : f32
    %95 = vector.broadcast %cst_35 : f32 to vector<8x1xf32>
    %96 = arith.divf %94, %95 : vector<8x1xf32>
    %cst_36 = arith.constant 9.99999997E-7 : f32
    %97 = vector.broadcast %cst_36 : f32 to vector<8x1xf32>
    %98 = arith.addf %96, %97 : vector<8x1xf32>
    %99 = math.rsqrt %98 : vector<8x1xf32>
    %100 = vector.broadcast %99 : vector<8x1xf32> to vector<8x32xf32>
    %101 = arith.mulf %89, %100 : vector<8x32xf32>
    %cst_37 = arith.constant 1.000000e+00 : f32
    %102 = vector.broadcast %cst_37 : f32 to vector<1x32xf32>
    %103 = arith.addf %102, %91 : vector<1x32xf32>
    %104 = vector.broadcast %103 : vector<1x32xf32> to vector<8x32xf32>
    %105 = arith.mulf %101, %104 : vector<8x32xf32>
    %c0_38 = arith.constant 0 : index
    %c0_39 = arith.constant 0 : index
    %c0_40 = arith.constant 0 : index
    %106 = vector.load %arg10[%c0_38, %c0_39, %c0_40] : memref<1x32x128xf32, #tpu.memory_space<vmem>>, vector<1x32x128xf32>
    %107 = vector.shape_cast %106 : vector<1x32x128xf32> to vector<32x128xf32>
    %cst_41 = arith.constant dense<0.000000e+00> : vector<8x128xf32>
    %108 = tpu.matmul %105, %107, %cst_41 {dimension_numbers = #tpu.dot_dimension_numbers<[1], [0], [0], [1], [0, 0, 1, 1], [], []>} : vector<8x32xf32>, vector<32x128xf32>, vector<8x128xf32> -> vector<8x128xf32>
    %109 = vector.extract_strided_slice %108 {offsets = [0, 0], sizes = [8, 64], strides = [1, 1]} : vector<8x128xf32> to vector<8x64xf32>
    %110 = arith.mulf %109, %109 : vector<8x64xf32>
    %111 = arith.mulf %109, %110 : vector<8x64xf32>
    %cst_42 = arith.constant 4.471500e-02 : f32
    %112 = vector.broadcast %cst_42 : f32 to vector<8x64xf32>
    %113 = arith.mulf %112, %111 : vector<8x64xf32>
    %114 = arith.addf %109, %113 : vector<8x64xf32>
    %cst_43 = arith.constant 0.797884583 : f32
    %115 = vector.broadcast %cst_43 : f32 to vector<8x64xf32>
    %116 = arith.mulf %115, %114 : vector<8x64xf32>
    %117 = math.tanh %116 : vector<8x64xf32>
    %cst_44 = arith.constant 1.000000e+00 : f32
    %118 = vector.broadcast %cst_44 : f32 to vector<8x64xf32>
    %119 = arith.addf %118, %117 : vector<8x64xf32>
    %cst_45 = arith.constant 5.000000e-01 : f32
    %120 = vector.broadcast %cst_45 : f32 to vector<8x64xf32>
    %121 = arith.mulf %120, %119 : vector<8x64xf32>
    %122 = arith.mulf %109, %121 : vector<8x64xf32>
    %123 = vector.extract_strided_slice %108 {offsets = [0, 64], sizes = [8, 64], strides = [1, 1]} : vector<8x128xf32> to vector<8x64xf32>
    %124 = arith.mulf %122, %123 : vector<8x64xf32>
    %c0_46 = arith.constant 0 : index
    %c0_47 = arith.constant 0 : index
    %c0_48 = arith.constant 0 : index
    %125 = vector.load %arg11[%c0_46, %c0_47, %c0_48] : memref<1x64x32xf32, #tpu.memory_space<vmem>>, vector<1x64x32xf32>
    %126 = vector.shape_cast %125 : vector<1x64x32xf32> to vector<64x32xf32>
    %cst_49 = arith.constant dense<0.000000e+00> : vector<8x32xf32>
    %127 = tpu.matmul %124, %126, %cst_49 {dimension_numbers = #tpu.dot_dimension_numbers<[1], [0], [0], [1], [0, 0, 1, 1], [], []>} : vector<8x64xf32>, vector<64x32xf32>, vector<8x32xf32> -> vector<8x32xf32>
    %128 = arith.addf %89, %127 : vector<8x32xf32>
    %c1_i32 = arith.constant 1 : i32
    %129 = arith.cmpi slt, %arg1, %c1_i32 : i32
    %130 = arith.extui %129 : i1 to i32
    %c0_i32_50 = arith.constant 0 : i32
    %131 = arith.cmpi ne, %130, %c0_i32_50 : i32
    scf.if %131 {
      %c0_53 = arith.constant 0 : index
      %c0_54 = arith.constant 0 : index
      %c0_55 = arith.constant 0 : index
      %135 = vector.load %arg13[%c0_53, %c0_54, %c0_55] : memref<1x8x32xf32, #tpu.memory_space<vmem>>, vector<1x8x32xf32>
      %136 = vector.shape_cast %135 : vector<1x8x32xf32> to vector<8x32xf32>
      %137 = vector.shape_cast %128 : vector<8x32xf32> to vector<1x8x32xf32>
      tpu.vector_store %arg13[%c0_53, %c0_54, %c0_55], %137 {strides = array<i32>} : memref<1x8x32xf32, #tpu.memory_space<vmem>>, vector<1x8x32xf32>,
    } else {
    }
    %c1_i32_51 = arith.constant 1 : i32
    %132 = arith.cmpi eq, %arg1, %c1_i32_51 : i32
    %133 = arith.extui %132 : i1 to i32
    %c0_i32_52 = arith.constant 0 : i32
    %134 = arith.cmpi ne, %133, %c0_i32_52 : i32
    scf.if %134 {
      %c0_53 = arith.constant 0 : index
      %c0_54 = arith.constant 0 : index
      %135 = vector.load %arg12[%c0_53, %c0_54] : memref<1x32xf32, #tpu.memory_space<vmem>>, vector<1x32xf32>
      %136 = arith.mulf %128, %128 : vector<8x32xf32>
      %cst_55 = arith.constant dense<0.000000e+00> : vector<8xf32>
      %137 = vector.multi_reduction <add>, %136, %cst_55 [1] : vector<8x32xf32> to vector<8xf32>
      %138 = vector.shape_cast %137 : vector<8xf32> to vector<8x1xf32>
      %cst_56 = arith.constant 3.200000e+01 : f32
      %139 = vector.broadcast %cst_56 : f32 to vector<8x1xf32>
      %140 = arith.divf %138, %139 : vector<8x1xf32>
      %cst_57 = arith.constant 9.99999997E-7 : f32
      %141 = vector.broadcast %cst_57 : f32 to vector<8x1xf32>
      %142 = arith.addf %140, %141 : vector<8x1xf32>
      %143 = math.rsqrt %142 : vector<8x1xf32>
      %144 = vector.broadcast %143 : vector<8x1xf32> to vector<8x32xf32>
      %145 = arith.mulf %128, %144 : vector<8x32xf32>
      %cst_58 = arith.constant 1.000000e+00 : f32
      %146 = vector.broadcast %cst_58 : f32 to vector<1x32xf32>
      %147 = arith.addf %146, %135 : vector<1x32xf32>
      %148 = vector.broadcast %147 : vector<1x32xf32> to vector<8x32xf32>
      %149 = arith.mulf %145, %148 : vector<8x32xf32>
      %c0_59 = arith.constant 0 : index
      %c0_60 = arith.constant 0 : index
      %c0_61 = arith.constant 0 : index
      %150 = vector.load %arg13[%c0_59, %c0_60, %c0_61] : memref<1x8x32xf32, #tpu.memory_space<vmem>>, vector<1x8x32xf32>
      %151 = vector.shape_cast %150 : vector<1x8x32xf32> to vector<8x32xf32>
      %152 = vector.shape_cast %149 : vector<8x32xf32> to vector<1x8x32xf32>
      tpu.vector_store %arg13[%c0_59, %c0_60, %c0_61], %152 {strides = array<i32>} : memref<1x8x32xf32, #tpu.memory_space<vmem>>, vector<1x8x32xf32>,
    } else {
    }
    return
  }
  func.func @transform_0(%arg0: i32, %arg1: i32) -> (i32, i32, i32) {
    %c0_i32 = arith.constant 0 : i32
    %c0_i32_0 = arith.constant 0 : i32
    %c0_i32_1 = arith.constant 0 : i32
    return %arg0, %c0_i32, %c0_i32_0 : i32, i32, i32
  }
  func.func @transform_1(%arg0: i32, %arg1: i32) -> (i32, i32, i32) {
    %c0_i32 = arith.constant 0 : i32
    %c0_i32_0 = arith.constant 0 : i32
    %c0_i32_1 = arith.constant 0 : i32
    return %arg0, %c0_i32, %c0_i32_0 : i32, i32, i32
  }
  func.func @transform_2(%arg0: i32, %arg1: i32) -> (i32, i32, i32) {
    %c0_i32 = arith.constant 0 : i32
    %c0_i32_0 = arith.constant 0 : i32
    %c0_i32_1 = arith.constant 0 : i32
    return %arg0, %c0_i32, %c0_i32_0 : i32, i32, i32
  }
  func.func @transform_3(%arg0: i32, %arg1: i32) -> (i32, i32, i32) {
    %c0_i32 = arith.constant 0 : i32
    %c0_i32_0 = arith.constant 0 : i32
    %c0_i32_1 = arith.constant 0 : i32
    return %arg0, %c0_i32, %c0_i32_0 : i32, i32, i32
  }
  func.func @transform_4(%arg0: i32, %arg1: i32) -> (i32, i32, i32) {
    %c0_i32 = arith.constant 0 : i32
    %c0_i32_0 = arith.constant 0 : i32
    %c0_i32_1 = arith.constant 0 : i32
    return %arg1, %c0_i32, %c0_i32_0 : i32, i32, i32
  }
  func.func @transform_5(%arg0: i32, %arg1: i32) -> (i32, i32, i32) {
    %c0_i32 = arith.constant 0 : i32
    %c0_i32_0 = arith.constant 0 : i32
    %c0_i32_1 = arith.constant 0 : i32
    return %arg1, %c0_i32, %c0_i32_0 : i32, i32, i32
  }
  func.func @transform_6(%arg0: i32, %arg1: i32) -> (i32, i32, i32) {
    %c0_i32 = arith.constant 0 : i32
    %c0_i32_0 = arith.constant 0 : i32
    %c0_i32_1 = arith.constant 0 : i32
    return %arg1, %c0_i32, %c0_i32_0 : i32, i32, i32
  }
  func.func @transform_7(%arg0: i32, %arg1: i32) -> (i32, i32, i32) {
    %c0_i32 = arith.constant 0 : i32
    %c0_i32_0 = arith.constant 0 : i32
    %c0_i32_1 = arith.constant 0 : i32
    return %arg1, %c0_i32, %c0_i32_0 : i32, i32, i32
  }
  func.func @transform_8(%arg0: i32, %arg1: i32) -> (i32, i32, i32) {
    %c0_i32 = arith.constant 0 : i32
    %c0_i32_0 = arith.constant 0 : i32
    %c0_i32_1 = arith.constant 0 : i32
    return %arg1, %c0_i32, %c0_i32_0 : i32, i32, i32
  }
  func.func @transform_9(%arg0: i32, %arg1: i32) -> (i32, i32, i32) {
    %c0_i32 = arith.constant 0 : i32
    %c0_i32_0 = arith.constant 0 : i32
    %c0_i32_1 = arith.constant 0 : i32
    return %arg1, %c0_i32, %c0_i32_0 : i32, i32, i32
  }
  func.func @transform_10(%arg0: i32, %arg1: i32) -> (i32, i32) {
    %c0_i32 = arith.constant 0 : i32
    %c0_i32_0 = arith.constant 0 : i32
    %c0_i32_1 = arith.constant 0 : i32
    return %c0_i32, %c0_i32_0 : i32, i32
  }
  func.func @transform_11(%arg0: i32, %arg1: i32) -> (i32, i32, i32) {
    %c0_i32 = arith.constant 0 : i32
    %c0_i32_0 = arith.constant 0 : i32
    %c0_i32_1 = arith.constant 0 : i32
    return %arg0, %c0_i32, %c0_i32_0 : i32, i32, i32
  }
}

</mosaic_0001>

<llo_original>
// kernel: tpu_custom_call.1
$region0: #{tpu_custom_call.1}
  #allocation0 [shape = 'u32[]', space=smem, size = 0x4, offset = 0x4, fixed_abs, tag = 'smem constant byte address 0x4 - core index']
  #allocation1 [shape = 'u32[72,128]{1,0:T(1,128)}', space=vmem, size = 0x9000, scoped, tag = 'internal scratch']
  %s0 = inlined_call_operand.vmem [shape: f32[2,8,32], index: 0, kind: input, shape index: {}]
  %s1 = inlined_call_operand.vmem [shape: f32[2,8,8], index: 1, kind: input, shape index: {}]
  %s2 = inlined_call_operand.vmem [shape: f32[2,8,16], index: 2, kind: input, shape index: {}]
  %s3 = inlined_call_operand.vmem [shape: f32[2,8,16], index: 3, kind: input, shape index: {}]
  %s4 = inlined_call_operand.vmem [shape: f32[2,1,32], index: 4, kind: input, shape index: {}]
  %s5 = inlined_call_operand.vmem [shape: f32[2,32,128], index: 5, kind: input, shape index: {}]
  %s6 = inlined_call_operand.vmem [shape: f32[2,64,32], index: 6, kind: input, shape index: {}]
  %s7 = inlined_call_operand.vmem [shape: f32[2,1,32], index: 7, kind: input, shape index: {}]
  %s8 = inlined_call_operand.vmem [shape: f32[2,32,128], index: 8, kind: input, shape index: {}]
  %s9 = inlined_call_operand.vmem [shape: f32[2,64,32], index: 9, kind: input, shape index: {}]
  %s10 = inlined_call_operand.vmem [shape: f32[1,32], index: 10, kind: input, shape index: {}]
  %s11 = inlined_call_operand.hbm [shape: f32[2,8,32], index: 11, kind: output, shape index: {}]
  %s12 = sld [smem:[#allocation0]]
  $region89: #{tpu_custom_call.1} parent=0
    _
  %s14 = ssub.s32 1, %s12
  %s15 = scalar_select 0, %s14, %s12
  $region1: #{tpu_custom_call.1} parent=0
    #allocation2 [shape = 'u8[8192]{0}', space=vmem, size = 0x2000, scoped, tag = 'output window, operand 0']
    #allocation3 [shape = 's32[2]{0}', space=sflag, size = 0x8, scoped, tag = 'scoped memory for tpu_custom_call.1']
    %16 = vsyncpa [#allocation3], 0
    %s17 = scalar_lea.sflag [#allocation3], 1
    %18 = vsyncpa %s17, 0
    loop: start=0, step=1, limit=6
    $region2: #{tpu_custom_call.1} parent=1 // loop_pre_header
      _
    $region3: #{tpu_custom_call.1} parent=1 // loop_header
      %s20 = sphi 0, %s24
      %p21 = scmp.ge.s32.totalorder %s20, 6
      %s27 = sphi 0, %s39
      %s28 = sphi 0, %s35
      %s29 = sphi 0, %s27
      %s30 = sphi 0, %s28
      %s31 = sphi 0, %s29
      %s32 = sphi 0, %s30
      %s42 = sphi 0, %s44
      %s45 = sphi 0, %s42
      %s46 = sphi 0, %s45
      %s62 = sphi 0, %s46
      %s68 = sphi 0, %s70
      %s71 = sphi 0, %s68
      %s72 = sphi 0, %s71
      %s88 = sphi 0, %s72
      %s94 = sphi 0, %s96
      %s97 = sphi 0, %s94
      %s98 = sphi 0, %s97
      %s114 = sphi 0, %s98
      %s120 = sphi 0, %s122
      %s123 = sphi 0, %s120
      %s124 = sphi 0, %s123
      %s140 = sphi 0, %s124
      %s146 = sphi 0, %s148
      %s149 = sphi 0, %s146
      %s150 = sphi 0, %s149
      %s166 = sphi 0, %s150
      %s172 = sphi 0, %s174
      %s175 = sphi 0, %s172
      %s176 = sphi 0, %s175
      %s192 = sphi 0, %s176
      %s198 = sphi 0, %s200
      %s201 = sphi 0, %s198
      %s202 = sphi 0, %s201
      %s218 = sphi 0, %s202
      %s224 = sphi 0, %s226
      %s227 = sphi 0, %s224
      %s228 = sphi 0, %s227
      %s244 = sphi 0, %s228
      %s250 = sphi 0, %s252
      %s253 = sphi 0, %s250
      %s254 = sphi 0, %s253
      %s270 = sphi 0, %s254
      %s276 = sphi 0, %s278
      %s279 = sphi 0, %s276
      %s280 = sphi 0, %s279
      %s296 = sphi 0, %s280
      %s300 = sphi 0, %s300
      %s302 = sphi 0, %s300
      %s303 = sphi 0, %s302
      %s317 = sphi 0, %s303
      %s323 = sphi 0, %s325
      %s326 = sphi 0, %s323
      %s327 = sphi 0, %s326
      %s343 = sphi 0, %s327
    $region4: #{tpu_custom_call.1} parent=1 // loop_header_branch
      %23 = sbr.rel (%p21) target = $region8
    $region5: #{tpu_custom_call.1} parent=1 // loop_body
      %s25 = ssub.s32 %s20, 1
      %s26 = ssub.s32 %s20, 2
      %s33 = sadd.s32 1, %s28
      %p34 = scmp.ge.s32.totalorder %s33, 2
      %s35 = scalar_select %p34, 0, %s33
      %s36 = sadd.s32 1, %s27
      %s37 = scalar_select %p34, %s36, %s27
      %p38 = scmp.ge.s32.totalorder %s37, 2
      %s39 = scalar_select %p38, 0, %s37
      %s40 = ssub.s32 %s27, %s39
      %p41 = scmp.eq.s32.totalorder %s40, 0
      %s43 = sadd.s32 %s42, 1
      %s44 = scalar_select %p41, %s42, %s43
      %p47 = pneg %p41
      %p48 = scmp.eq.s32.totalorder %s20, 3
      %p49 = por %p47, %p48
      %p50 = scmp.ne.s32.totalorder %s42, %s45
      %p51 = scmp.eq.s32.totalorder %s20, 0
      %p52 = por %p50, %p51
      %p53 = scmp.ne.s32.totalorder %s42, %s45
      %p54 = scmp.eq.s32.totalorder %s25, 3
      %p55 = por %p53, %p54
      %p56 = scmp.ne.s32.totalorder %s45, %s46
      %p57 = scmp.eq.s32.totalorder %s25, 0
      %p58 = por %p56, %p57
      %p59 = scmp.ne.s32.totalorder %s45, %s46
      %p60 = scmp.eq.s32.totalorder %s26, 3
      %p61 = por %p59, %p60
      %p63 = scmp.ne.s32.totalorder %s46, %s62
      %p64 = scmp.eq.s32.totalorder %s26, 0
      %p65 = por %p63, %p64
      %s66 = ssub.s32 %s27, %s39
      %p67 = scmp.eq.s32.totalorder %s66, 0
      %s69 = sadd.s32 %s68, 1
      %s70 = scalar_select %p67, %s68, %s69
      %p73 = pneg %p67
      %p74 = scmp.eq.s32.totalorder %s20, 3
      %p75 = por %p73, %p74
      %p76 = scmp.ne.s32.totalorder %s68, %s71
      %p77 = scmp.eq.s32.totalorder %s20, 0
      %p78 = por %p76, %p77
      %p79 = scmp.ne.s32.totalorder %s68, %s71
      %p80 = scmp.eq.s32.totalorder %s25, 3
      %p81 = por %p79, %p80
      %p82 = scmp.ne.s32.totalorder %s71, %s72
      %p83 = scmp.eq.s32.totalorder %s25, 0
      %p84 = por %p82, %p83
      %p85 = scmp.ne.s32.totalorder %s71, %s72
      %p86 = scmp.eq.s32.totalorder %s26, 3
      %p87 = por %p85, %p86
      %p89 = scmp.ne.s32.totalorder %s72, %s88
      %p90 = scmp.eq.s32.totalorder %s26, 0
      %p91 = por %p89, %p90
      %s92 = ssub.s32 %s27, %s39
      %p93 = scmp.eq.s32.totalorder %s92, 0
      %s95 = sadd.s32 %s94, 1
      %s96 = scalar_select %p93, %s94, %s95
      %p99 = pneg %p93
      %p100 = scmp.eq.s32.totalorder %s20, 3
      %p101 = por %p99, %p100
      %p102 = scmp.ne.s32.totalorder %s94, %s97
      %p103 = scmp.eq.s32.totalorder %s20, 0
      %p104 = por %p102, %p103
      %p105 = scmp.ne.s32.totalorder %s94, %s97
      %p106 = scmp.eq.s32.totalorder %s25, 3
      %p107 = por %p105, %p106
      %p108 = scmp.ne.s32.totalorder %s97, %s98
      %p109 = scmp.eq.s32.totalorder %s25, 0
      %p110 = por %p108, %p109
      %p111 = scmp.ne.s32.totalorder %s97, %s98
      %p112 = scmp.eq.s32.totalorder %s26, 3
      %p113 = por %p111, %p112
      %p115 = scmp.ne.s32.totalorder %s98, %s114
      %p116 = scmp.eq.s32.totalorder %s26, 0
      %p117 = por %p115, %p116
      %s118 = ssub.s32 %s27, %s39
      %p119 = scmp.eq.s32.totalorder %s118, 0
      %s121 = sadd.s32 %s120, 1
      %s122 = scalar_select %p119, %s120, %s121
      %p125 = pneg %p119
      %p126 = scmp.eq.s32.totalorder %s20, 3
      %p127 = por %p125, %p126
      %p128 = scmp.ne.s32.totalorder %s120, %s123
      %p129 = scmp.eq.s32.totalorder %s20, 0
      %p130 = por %p128, %p129
      %p131 = scmp.ne.s32.totalorder %s120, %s123
      %p132 = scmp.eq.s32.totalorder %s25, 3
      %p133 = por %p131, %p132
      %p134 = scmp.ne.s32.totalorder %s123, %s124
      %p135 = scmp.eq.s32.totalorder %s25, 0
      %p136 = por %p134, %p135
      %p137 = scmp.ne.s32.totalorder %s123, %s124
      %p138 = scmp.eq.s32.totalorder %s26, 3
      %p139 = por %p137, %p138
      %p141 = scmp.ne.s32.totalorder %s124, %s140
      %p142 = scmp.eq.s32.totalorder %s26, 0
      %p143 = por %p141, %p142
      %s144 = ssub.s32 %s28, %s35
      %p145 = scmp.eq.s32.totalorder %s144, 0
      %s147 = sadd.s32 %s146, 1
      %s148 = scalar_select %p145, %s146, %s147
      %p151 = pneg %p145
      %p152 = scmp.eq.s32.totalorder %s20, 3
      %p153 = por %p151, %p152
      %p154 = scmp.ne.s32.totalorder %s146, %s149
      %p155 = scmp.eq.s32.totalorder %s20, 0
      %p156 = por %p154, %p155
      %p157 = scmp.ne.s32.totalorder %s146, %s149
      %p158 = scmp.eq.s32.totalorder %s25, 3
      %p159 = por %p157, %p158
      %p160 = scmp.ne.s32.totalorder %s149, %s150
      %p161 = scmp.eq.s32.totalorder %s25, 0
      %p162 = por %p160, %p161
      %p163 = scmp.ne.s32.totalorder %s149, %s150
      %p164 = scmp.eq.s32.totalorder %s26, 3
      %p165 = por %p163, %p164
      %p167 = scmp.ne.s32.totalorder %s150, %s166
      %p168 = scmp.eq.s32.totalorder %s26, 0
      %p169 = por %p167, %p168
      %s170 = ssub.s32 %s28, %s35
      %p171 = scmp.eq.s32.totalorder %s170, 0
      %s173 = sadd.s32 %s172, 1
      %s174 = scalar_select %p171, %s172, %s173
      %p177 = pneg %p171
      %p178 = scmp.eq.s32.totalorder %s20, 3
      %p179 = por %p177, %p178
      %p180 = scmp.ne.s32.totalorder %s172, %s175
      %p181 = scmp.eq.s32.totalorder %s20, 0
      %p182 = por %p180, %p181
      %p183 = scmp.ne.s32.totalorder %s172, %s175
      %p184 = scmp.eq.s32.totalorder %s25, 3
      %p185 = por %p183, %p184
      %p186 = scmp.ne.s32.totalorder %s175, %s176
      %p187 = scmp.eq.s32.totalorder %s25, 0
      %p188 = por %p186, %p187
      %p189 = scmp.ne.s32.totalorder %s175, %s176
      %p190 = scmp.eq.s32.totalorder %s26, 3
      %p191 = por %p189, %p190
      %p193 = scmp.ne.s32.totalorder %s176, %s192
      %p194 = scmp.eq.s32.totalorder %s26, 0
      %p195 = por %p193, %p194
      %s196 = ssub.s32 %s28, %s35
      %p197 = scmp.eq.s32.totalorder %s196, 0
      %s199 = sadd.s32 %s198, 1
      %s200 = scalar_select %p197, %s198, %s199
      %p203 = pneg %p197
      %p204 = scmp.eq.s32.totalorder %s20, 3
      %p205 = por %p203, %p204
      %p206 = scmp.ne.s32.totalorder %s198, %s201
      %p207 = scmp.eq.s32.totalorder %s20, 0
      %p208 = por %p206, %p207
      %p209 = scmp.ne.s32.totalorder %s198, %s201
      %p210 = scmp.eq.s32.totalorder %s25, 3
      %p211 = por %p209, %p210
      %p212 = scmp.ne.s32.totalorder %s201, %s202
      %p213 = scmp.eq.s32.totalorder %s25, 0
      %p214 = por %p212, %p213
      %p215 = scmp.ne.s32.totalorder %s201, %s202
      %p216 = scmp.eq.s32.totalorder %s26, 3
      %p217 = por %p215, %p216
      %p219 = scmp.ne.s32.totalorder %s202, %s218
      %p220 = scmp.eq.s32.totalorder %s26, 0
      %p221 = por %p219, %p220
      %s222 = ssub.s32 %s28, %s35
      %p223 = scmp.eq.s32.totalorder %s222, 0
      %s225 = sadd.s32 %s224, 1
      %s226 = scalar_select %p223, %s224, %s225
      %p229 = pneg %p223
      %p230 = scmp.eq.s32.totalorder %s20, 3
      %p231 = por %p229, %p230
      %p232 = scmp.ne.s32.totalorder %s224, %s227
      %p233 = scmp.eq.s32.totalorder %s20, 0
      %p234 = por %p232, %p233
      %p235 = scmp.ne.s32.totalorder %s224, %s227
      %p236 = scmp.eq.s32.totalorder %s25, 3
      %p237 = por %p235, %p236
      %p238 = scmp.ne.s32.totalorder %s227, %s228
      %p239 = scmp.eq.s32.totalorder %s25, 0
      %p240 = por %p238, %p239
      %p241 = scmp.ne.s32.totalorder %s227, %s228
      %p242 = scmp.eq.s32.totalorder %s26, 3
      %p243 = por %p241, %p242
      %p245 = scmp.ne.s32.totalorder %s228, %s244
      %p246 = scmp.eq.s32.totalorder %s26, 0
      %p247 = por %p245, %p246
      %s248 = ssub.s32 %s28, %s35
      %p249 = scmp.eq.s32.totalorder %s248, 0
      %s251 = sadd.s32 %s250, 1
      %s252 = scalar_select %p249, %s250, %s251
      %p255 = pneg %p249
      %p256 = scmp.eq.s32.totalorder %s20, 3
      %p257 = por %p255, %p256
      %p258 = scmp.ne.s32.totalorder %s250, %s253
      %p259 = scmp.eq.s32.totalorder %s20, 0
      %p260 = por %p258, %p259
      %p261 = scmp.ne.s32.totalorder %s250, %s253
      %p262 = scmp.eq.s32.totalorder %s25, 3
      %p263 = por %p261, %p262
      %p264 = scmp.ne.s32.totalorder %s253, %s254
      %p265 = scmp.eq.s32.totalorder %s25, 0
      %p266 = por %p264, %p265
      %p267 = scmp.ne.s32.totalorder %s253, %s254
      %p268 = scmp.eq.s32.totalorder %s26, 3
      %p269 = por %p267, %p268
      %p271 = scmp.ne.s32.totalorder %s254, %s270
      %p272 = scmp.eq.s32.totalorder %s26, 0
      %p273 = por %p271, %p272
      %s274 = ssub.s32 %s28, %s35
      %p275 = scmp.eq.s32.totalorder %s274, 0
      %s277 = sadd.s32 %s276, 1
      %s278 = scalar_select %p275, %s276, %s277
      %p281 = pneg %p275
      %p282 = scmp.eq.s32.totalorder %s20, 3
      %p283 = por %p281, %p282
      %p284 = scmp.ne.s32.totalorder %s276, %s279
      %p285 = scmp.eq.s32.totalorder %s20, 0
      %p286 = por %p284, %p285
      %p287 = scmp.ne.s32.totalorder %s276, %s279
      %p288 = scmp.eq.s32.totalorder %s25, 3
      %p289 = por %p287, %p288
      %p290 = scmp.ne.s32.totalorder %s279, %s280
      %p291 = scmp.eq.s32.totalorder %s25, 0
      %p292 = por %p290, %p291
      %p293 = scmp.ne.s32.totalorder %s279, %s280
      %p294 = scmp.eq.s32.totalorder %s26, 3
      %p295 = por %p293, %p294
      %p297 = scmp.ne.s32.totalorder %s280, %s296
      %p298 = scmp.eq.s32.totalorder %s26, 0
      %p299 = por %p297, %p298
      %s301 = sadd.s32 %s300, 1
      %p304 = scmp.eq.s32.totalorder %s20, 3
      %p305 = scmp.ne.s32.totalorder %s300, %s302
      %p306 = scmp.eq.s32.totalorder %s20, 0
      %p307 = por %p305, %p306
      %p308 = scmp.ne.s32.totalorder %s300, %s302
      %p309 = scmp.eq.s32.totalorder %s25, 3
      %p310 = por %p308, %p309
      %p311 = scmp.ne.s32.totalorder %s302, %s303
      %p312 = scmp.eq.s32.totalorder %s25, 0
      %p313 = por %p311, %p312
      %p314 = scmp.ne.s32.totalorder %s302, %s303
      %p315 = scmp.eq.s32.totalorder %s26, 3
      %p316 = por %p314, %p315
      %p318 = scmp.ne.s32.totalorder %s303, %s317
      %p319 = scmp.eq.s32.totalorder %s26, 0
      %p320 = por %p318, %p319
      %s321 = ssub.s32 %s27, %s39
      %p322 = scmp.eq.s32.totalorder %s321, 0
      %s324 = sadd.s32 %s323, 1
      %s325 = scalar_select %p322, %s323, %s324
      %p328 = pneg %p322
      %p329 = scmp.eq.s32.totalorder %s20, 3
      %p330 = por %p328, %p329
      %p331 = scmp.ne.s32.totalorder %s323, %s326
      %p332 = scmp.eq.s32.totalorder %s20, 0
      %p333 = por %p331, %p332
      %p334 = scmp.ne.s32.totalorder %s323, %s326
      %p335 = scmp.eq.s32.totalorder %s25, 3
      %p336 = por %p334, %p335
      %p337 = scmp.ne.s32.totalorder %s326, %s327
      %p338 = scmp.eq.s32.totalorder %s25, 0
      %p339 = por %p337, %p338
      %p340 = scmp.ne.s32.totalorder %s326, %s327
      %p341 = scmp.eq.s32.totalorder %s26, 3
      %p342 = por %p340, %p341
      %p344 = scmp.ne.s32.totalorder %s327, %s343
      %p345 = scmp.eq.s32.totalorder %s26, 0
      %p346 = por %p344, %p345
      %p347 = scmp.le.s32.totalorder 1, %s20
      %p348 = scmp.lt.s32.totalorder %s20, 5
      %p349 = pnand %p347, %p348
      %p350 = pneg %p349
      // Predicated region
      $region9: #{tpu_custom_call.1} parent=5 // pred_check
        _
      $region10: #{tpu_custom_call.1} parent=5 // pred_check_branch
        %352 = sbr.rel (%p349) target = $region12
      $region11: #{tpu_custom_call.1} parent=5 // pred_region
        %s353 = ssub.s32 %s20, 1
        // Predicated region
        $region13: #{tpu_custom_call.1} parent=11 // pred_check
          %p354 = pneg %p313
        $region14: #{tpu_custom_call.1} parent=11 // pred_check_branch
          %356 = sbr.rel (%p354) target = $region16
        $region15: #{tpu_custom_call.1} parent=11 // pred_region
          _
        $region16: #{tpu_custom_call.1} parent=11 // pred_fallthru
          _
      $region12: #{tpu_custom_call.1} parent=5 // pred_fallthru
        _
      %p357 = scmp.lt.s32.totalorder %s20, 4
      // Predicated region
      $region17: #{tpu_custom_call.1} parent=5 // pred_check
        %p358 = pneg %p357
      $region18: #{tpu_custom_call.1} parent=5 // pred_check_branch
        %360 = sbr.rel (%p358) target = $region20
      $region19: #{tpu_custom_call.1} parent=5 // pred_region
        // Predicated region
        $region21: #{tpu_custom_call.1} parent=19 // pred_check
          %p361 = pneg %p52
        $region22: #{tpu_custom_call.1} parent=19 // pred_check_branch
          %363 = sbr.rel (%p361) target = $region24
        $region23: #{tpu_custom_call.1} parent=19 // pred_region
          %p364 = scmp.lt.s32.totalorder %s27, 1
          %s365 = scalar_select %p364, %s27, 1
          %s366 = smul.addr %s365, 8
          %s367 = scalar_lea.vmem %s0, %s366
        $region24: #{tpu_custom_call.1} parent=19 // pred_fallthru
          _
        // Predicated region
        $region25: #{tpu_custom_call.1} parent=19 // pred_check
          %p368 = pneg %p78
        $region26: #{tpu_custom_call.1} parent=19 // pred_check_branch
          %370 = sbr.rel (%p368) target = $region28
        $region27: #{tpu_custom_call.1} parent=19 // pred_region
          %p371 = scmp.lt.s32.totalorder %s27, 1
          %s372 = scalar_select %p371, %s27, 1
          %s373 = smul.addr %s372, 8
          %s374 = scalar_lea.vmem %s1, %s373
        $region28: #{tpu_custom_call.1} parent=19 // pred_fallthru
          _
        // Predicated region
        $region29: #{tpu_custom_call.1} parent=19 // pred_check
          %p375 = pneg %p104
        $region30: #{tpu_custom_call.1} parent=19 // pred_check_branch
          %377 = sbr.rel (%p375) target = $region32
        $region31: #{tpu_custom_call.1} parent=19 // pred_region
          %p378 = scmp.lt.s32.totalorder %s27, 1
          %s379 = scalar_select %p378, %s27, 1
          %s380 = smul.addr %s379, 8
          %s381 = scalar_lea.vmem %s2, %s380
        $region32: #{tpu_custom_call.1} parent=19 // pred_fallthru
          _
        // Predicated region
        $region33: #{tpu_custom_call.1} parent=19 // pred_check
          %p382 = pneg %p130
        $region34: #{tpu_custom_call.1} parent=19 // pred_check_branch
          %384 = sbr.rel (%p382) target = $region36
        $region35: #{tpu_custom_call.1} parent=19 // pred_region
          %p385 = scmp.lt.s32.totalorder %s27, 1
          %s386 = scalar_select %p385, %s27, 1
          %s387 = smul.addr %s386, 8
          %s388 = scalar_lea.vmem %s3, %s387
        $region36: #{tpu_custom_call.1} parent=19 // pred_fallthru
          _
        // Predicated region
        $region37: #{tpu_custom_call.1} parent=19 // pred_check
          %p389 = pneg %p156
        $region38: #{tpu_custom_call.1} parent=19 // pred_check_branch
          %391 = sbr.rel (%p389) target = $region40
        $region39: #{tpu_custom_call.1} parent=19 // pred_region
          %p392 = scmp.lt.s32.totalorder %s28, 1
          %s393 = scalar_select %p392, %s28, 1
          %s394 = scalar_lea.vmem %s4, %s393
        $region40: #{tpu_custom_call.1} parent=19 // pred_fallthru
          _
        // Predicated region
        $region41: #{tpu_custom_call.1} parent=19 // pred_check
          %p395 = pneg %p182
        $region42: #{tpu_custom_call.1} parent=19 // pred_check_branch
          %397 = sbr.rel (%p395) target = $region44
        $region43: #{tpu_custom_call.1} parent=19 // pred_region
          %p398 = scmp.lt.s32.totalorder %s28, 1
          %s399 = scalar_select %p398, %s28, 1
          %s400 = smul.addr %s399, 4
          %s401 = smul.addr %s400, 8
          %s402 = scalar_lea.vmem %s5, %s401
        $region44: #{tpu_custom_call.1} parent=19 // pred_fallthru
          _
        // Predicated region
        $region45: #{tpu_custom_call.1} parent=19 // pred_check
          %p403 = pneg %p208
        $region46: #{tpu_custom_call.1} parent=19 // pred_check_branch
          %405 = sbr.rel (%p403) target = $region48
        $region47: #{tpu_custom_call.1} parent=19 // pred_region
          %p406 = scmp.lt.s32.totalorder %s28, 1
          %s407 = scalar_select %p406, %s28, 1
          %s408 = smul.addr %s407, 8
          %s409 = smul.addr %s408, 8
          %s410 = scalar_lea.vmem %s6, %s409
        $region48: #{tpu_custom_call.1} parent=19 // pred_fallthru
          _
        // Predicated region
        $region49: #{tpu_custom_call.1} parent=19 // pred_check
          %p411 = pneg %p234
        $region50: #{tpu_custom_call.1} parent=19 // pred_check_branch
          %413 = sbr.rel (%p411) target = $region52
        $region51: #{tpu_custom_call.1} parent=19 // pred_region
          %p414 = scmp.lt.s32.totalorder %s28, 1
          %s415 = scalar_select %p414, %s28, 1
          %s416 = scalar_lea.vmem %s7, %s415
        $region52: #{tpu_custom_call.1} parent=19 // pred_fallthru
          _
        // Predicated region
        $region53: #{tpu_custom_call.1} parent=19 // pred_check
          %p417 = pneg %p260
        $region54: #{tpu_custom_call.1} parent=19 // pred_check_branch
          %419 = sbr.rel (%p417) target = $region56
        $region55: #{tpu_custom_call.1} parent=19 // pred_region
          %p420 = scmp.lt.s32.totalorder %s28, 1
          %s421 = scalar_select %p420, %s28, 1
          %s422 = smul.addr %s421, 4
          %s423 = smul.addr %s422, 8
          %s424 = scalar_lea.vmem %s8, %s423
        $region56: #{tpu_custom_call.1} parent=19 // pred_fallthru
          _
        // Predicated region
        $region57: #{tpu_custom_call.1} parent=19 // pred_check
          %p425 = pneg %p286
        $region58: #{tpu_custom_call.1} parent=19 // pred_check_branch
          %427 = sbr.rel (%p425) target = $region60
        $region59: #{tpu_custom_call.1} parent=19 // pred_region
          %p428 = scmp.lt.s32.totalorder %s28, 1
          %s429 = scalar_select %p428, %s28, 1
          %s430 = smul.addr %s429, 8
          %s431 = smul.addr %s430, 8
          %s432 = scalar_lea.vmem %s9, %s431
        $region60: #{tpu_custom_call.1} parent=19 // pred_fallthru
          _
      $region20: #{tpu_custom_call.1} parent=5 // pred_fallthru
        _
      %p433 = scmp.le.s32.totalorder 1, %s20
      %p434 = scmp.lt.s32.totalorder %s20, 5
      %p435 = pnand %p433, %p434
      %p436 = pneg %p435
      // Predicated region
      $region61: #{tpu_custom_call.1} parent=5 // pred_check
        _
      $region62: #{tpu_custom_call.1} parent=5 // pred_check_branch
        %438 = sbr.rel (%p435) target = $region64
      $region63: #{tpu_custom_call.1} parent=5 // pred_region
        %s439 = ssub.s32 %s20, 1
        %p440 = scmp.lt.s32.totalorder %s29, 1
        %s441 = scalar_select %p440, %s29, 1
        %s442 = smul.addr %s441, 8
        %s443 = scalar_lea.vmem %s0, %s442
        %p444 = pneg %p58
        %p445 = pneg %p55
        %p446 = scmp.lt.s32.totalorder %s29, 1
        %s447 = scalar_select %p446, %s29, 1
        %s448 = smul.addr %s447, 8
        %s449 = scalar_lea.vmem %s1, %s448
        %p450 = pneg %p84
        %p451 = pneg %p81
        %p452 = scmp.lt.s32.totalorder %s29, 1
        %s453 = scalar_select %p452, %s29, 1
        %s454 = smul.addr %s453, 8
        %s455 = scalar_lea.vmem %s2, %s454
        %p456 = pneg %p110
        %p457 = pneg %p107
        %p458 = scmp.lt.s32.totalorder %s29, 1
        %s459 = scalar_select %p458, %s29, 1
        %s460 = smul.addr %s459, 8
        %s461 = scalar_lea.vmem %s3, %s460
        %p462 = pneg %p136
        %p463 = pneg %p133
        %p464 = scmp.lt.s32.totalorder %s30, 1
        %s465 = scalar_select %p464, %s30, 1
        %s466 = scalar_lea.vmem %s4, %s465
        %p467 = pneg %p162
        %p468 = pneg %p159
        %p469 = scmp.lt.s32.totalorder %s30, 1
        %s470 = scalar_select %p469, %s30, 1
        %s471 = smul.addr %s470, 4
        %s472 = smul.addr %s471, 8
        %s473 = scalar_lea.vmem %s5, %s472
        %p474 = pneg %p188
        %p475 = pneg %p185
        %p476 = scmp.lt.s32.totalorder %s30, 1
        %s477 = scalar_select %p476, %s30, 1
        %s478 = smul.addr %s477, 8
        %s479 = smul.addr %s478, 8
        %s480 = scalar_lea.vmem %s6, %s479
        %p481 = pneg %p214
        %p482 = pneg %p211
        %p483 = scmp.lt.s32.totalorder %s30, 1
        %s484 = scalar_select %p483, %s30, 1
        %s485 = scalar_lea.vmem %s7, %s484
        %p486 = pneg %p240
        %p487 = pneg %p237
        %p488 = scmp.lt.s32.totalorder %s30, 1
        %s489 = scalar_select %p488, %s30, 1
        %s490 = smul.addr %s489, 4
        %s491 = smul.addr %s490, 8
        %s492 = scalar_lea.vmem %s8, %s491
        %p493 = pneg %p266
        %p494 = pneg %p263
        %p495 = scmp.lt.s32.totalorder %s30, 1
        %s496 = scalar_select %p495, %s30, 1
        %s497 = smul.addr %s496, 8
        %s498 = smul.addr %s497, 8
        %s499 = scalar_lea.vmem %s9, %s498
        %p500 = pneg %p292
        %p501 = pneg %p289
        %p502 = pneg %p313
        %p503 = pneg %p310
        %p504 = pneg %p339
        %p505 = pneg %p336
        %s506 = sand.u32 %s326, 1
        %s507 = scalar_lea.sflag [#allocation3], %s506
        %s508 = sand.u32 %s326, 1
        %s509 = smul.addr %s508, 8
        %s510 = scalar_lea.vmem [#allocation2], %s509
        %p511 = scmp.lt.s32.totalorder %s29, 1
        %s512 = scalar_select %p511, %s29, 1
        %s513 = smul.addr %s512, 8
        %s514 = scalar_lea.vmem %s0, %s513
        %p515 = scmp.lt.s32.totalorder %s29, 1
        %s516 = scalar_select %p515, %s29, 1
        %s517 = smul.addr %s516, 8
        %s518 = scalar_lea.vmem %s1, %s517
        %p519 = scmp.lt.s32.totalorder %s29, 1
        %s520 = scalar_select %p519, %s29, 1
        %s521 = smul.addr %s520, 8
        %s522 = scalar_lea.vmem %s2, %s521
        %p523 = scmp.lt.s32.totalorder %s29, 1
        %s524 = scalar_select %p523, %s29, 1
        %s525 = smul.addr %s524, 8
        %s526 = scalar_lea.vmem %s3, %s525
        %p527 = scmp.lt.s32.totalorder %s30, 1
        %s528 = scalar_select %p527, %s30, 1
        %s529 = scalar_lea.vmem %s4, %s528
        %p530 = scmp.lt.s32.totalorder %s30, 1
        %s531 = scalar_select %p530, %s30, 1
        %s532 = smul.addr %s531, 4
        %s533 = smul.addr %s532, 8
        %s534 = scalar_lea.vmem %s5, %s533
        %p535 = scmp.lt.s32.totalorder %s30, 1
        %s536 = scalar_select %p535, %s30, 1
        %s537 = smul.addr %s536, 8
        %s538 = smul.addr %s537, 8
        %s539 = scalar_lea.vmem %s6, %s538
        %p540 = scmp.lt.s32.totalorder %s30, 1
        %s541 = scalar_select %p540, %s30, 1
        %s542 = scalar_lea.vmem %s7, %s541
        %p543 = scmp.lt.s32.totalorder %s30, 1
        %s544 = scalar_select %p543, %s30, 1
        %s545 = smul.addr %s544, 4
        %s546 = smul.addr %s545, 8
        %s547 = scalar_lea.vmem %s8, %s546
        %p548 = scmp.lt.s32.totalorder %s30, 1
        %s549 = scalar_select %p548, %s30, 1
        %s550 = smul.addr %s549, 8
        %s551 = smul.addr %s550, 8
        %s552 = scalar_lea.vmem %s9, %s551
        %p553 = scmp.eq.s32.totalorder %s30, 0
        // Predicated region
        $region65: #{tpu_custom_call.1} parent=63 // pred_check
          %p554 = pneg %p553
        $region66: #{tpu_custom_call.1} parent=63 // pred_check_branch
          %556 = sbr.rel (%p554) target = $region68
        $region67: #{tpu_custom_call.1} parent=63 // pred_region
          %v557 = vld [vmem:[%s514] sm:$0xff]
          %v558 = vmul.f32 %v557, 5.656854
          %vm559 = vcmask 261120
          %560 = vst.msk [vmem:[%s510] sm:$0xff] %vm559, %v558
        $region68: #{tpu_custom_call.1} parent=63 // pred_fallthru
          _
        %v561 = vld [vmem:[%s510] sm:$0xff]
        %v562 = vld [vmem:[%s518] sm:$0xff]
        %v563 = vld [vmem:[%s522] sm:$0xff]
        %v564 = vld [vmem:[%s526] sm:$0xff]
        %v565 = vld [vmem:[%s529] sm:$0x1]
        %v566 = vmul.f32 %v561, %v561
        %vm567 = vcmask 261120
        %v568 = vsel %vm567, %v566, 0.0
        %569 = vadd.xlane.f32.xlu0 %v568
        %v570 = vpop.xlane.xlu0 %569
        %v571 = vrcp.pop 32.0
        %v572 = vmul.f32 32.0, %v571
        %v573 = vsub.f32 1.0, %v572
        %v574 = vmul.f32 %v571, %v573
        %v575 = vadd.f32 %v571, %v574
        %vm576 = vweird.f32 %v571
        %v577 = vsel %vm576, %v571, %v575
        %v578 = vmul.f32 %v570, %v577
        %v579 = vadd.f32 %v578, 1e-06
        %v580 = vrsqrt.pop %v579
        %v581 = vmul.f32 %v580, %v579
        %v582 = vmul.f32 %v581, %v580
        %v583 = vmul.f32 0.5, %v582
        %v584 = vsub.f32 1.5, %v583
        %v585 = vmul.f32 %v580, %v584
        %vm586 = vweird.f32 %v579
        %vm587 = vweird.f32 %v580
        %vm588 = vmor %vm586, %vm587
        %v589 = vsel %vm588, %v580, %v585
        %v590 = vmul.f32 %v561, %v589
        %v591 = vadd.f32 %v565, 1.0
        %v593 = vperm.slane %v591, 0
        %v595 = vmul.f32 %v590, %v593
        %v596 = vld [vmem:[%s534] sm:$0xff]
        %v597 = vld [vmem:[%s534 + $0x8] sm:$0xff]
        %v598 = vld [vmem:[%s534 + $0x10] sm:$0xff]
        %v599 = vld [vmem:[%s534 + $0x18] sm:$0xff]
        %v601 = vsel %vm567, %v595, 0
        %603 = vmatpush.msra.mxu0 0.0
        %604 = vmatpush.msra.mxu0 0.0
        %605 = vmatpush.msra.mxu0 0.0
        %606 = vmatpush.msra.mxu0 0.0
        %607 = vmatpush.msra.mxu0 0.0
        %608 = vmatpush.msra.mxu0 0.0
        %609 = vmatpush.msra.mxu0 0.0
        %610 = vmatpush.msra.mxu0 0.0
        %611 = vmatpush.msra.mxu0 0.0
        %612 = vmatpush.msra.mxu0 0.0
        %613 = vmatpush.msra.mxu0 0.0
        %614 = vmatpush.msra.mxu0 0.0
        %615 = vmatpush.msra.mxu0 %v599
        %616 = vmatpush.msra.mxu0 %v598
        %617 = vmatpush.msra.mxu0 %v597
        %618 = vmatpush.msra.mxu0 %v596
        %619 = vmatmul.f32.gmra.mxu0 %v601
        %v620 = vpop.f32.mrf.mxu0
        %v621 = vadd.f32 0.0, %v620
        %622 = vdwg.mxu0
        %624 = vrot.lane.b32.xlu0 %v621, 112
        %v625 = vpop.permute.xlu0 %624
        %627 = vrot.lane.b32.xlu0 %v621, 96
        %v628 = vpop.permute.xlu0 %627
        %630 = vrot.lane.b32.xlu0 %v621, 80
        %v631 = vpop.permute.xlu0 %630
        %v633 = vrot.slane %v628, 4
        %vm634 = vcmask 1047556
        %v635 = vsel %vm634, %v633, %v621
        %v636 = vrot.slane %v621, 4
        %v637 = vsel %vm634, %v628, %v636
        %v639 = vunpack.c.l.s4 1983009808
        %v640 = vunpack.c.0.s8 %v639
        %v641 = vperm.slane %v635, %v640
        %v643 = vunpack.c.l.s4 1983009808
        %v644 = vunpack.c.0.s8 %v643
        %v645 = vperm.slane %v637, %v644
        %v646 = vrot.slane %v631, 4
        %v647 = vsel %vm634, %v646, %v625
        %v648 = vrot.slane %v625, 4
        %v649 = vsel %vm634, %v631, %v648
        %v651 = vunpack.c.l.s4 1983009808
        %v652 = vunpack.c.0.s8 %v651
        %v653 = vperm.slane %v647, %v652
        %v655 = vunpack.c.l.s4 1983009808
        %v656 = vunpack.c.0.s8 %v655
        %v657 = vperm.slane %v649, %v656
        %v658 = vrot.slane %v653, 4
        %v659 = vsel %vm634, %v658, %v641
        %v660 = vrot.slane %v641, 4
        %v661 = vsel %vm634, %v653, %v660
        %v663 = vunpack.c.l.s4 1934713408
        %v664 = vunpack.c.0.s8 %v663
        %v665 = vperm.slane %v659, %v664
        %v667 = vunpack.c.l.s4 1934713408
        %v668 = vunpack.c.0.s8 %v667
        %v669 = vperm.slane %v661, %v668
        %v670 = vrot.slane %v657, 4
        %v671 = vsel %vm634, %v670, %v645
        %v672 = vrot.slane %v645, 4
        %v673 = vsel %vm634, %v657, %v672
        %v675 = vunpack.c.l.s4 1934713408
        %v676 = vunpack.c.0.s8 %v675
        %v677 = vperm.slane %v671, %v676
        %v679 = vunpack.c.l.s4 1934713408
        %v680 = vunpack.c.0.s8 %v679
        %v681 = vperm.slane %v673, %v680
        %v682 = vrot.slane %v665, 4
        %v683 = vsel %vm634, 0.0, %v682
        %v684 = vrot.slane %v669, 4
        %v685 = vsel %vm634, 0.0, %v684
        %v686 = vrot.slane %v677, 4
        %v687 = vsel %vm634, 0.0, %v686
        %v688 = vrot.slane %v681, 4
        %v689 = vsel %vm634, 0.0, %v688
        %v690 = vsel %vm634, %v684, %v665
        %v692 = vunpack.c.l.s4 1983009808
        %v693 = vunpack.c.0.s8 %v692
        %v694 = vperm.slane %v690, %v693
        %v695 = vrot.slane %v685, 4
        %v696 = vsel %vm634, %v695, %v683
        %v698 = vunpack.c.l.s4 1983009808
        %v699 = vunpack.c.0.s8 %v698
        %v700 = vperm.slane %v696, %v699
        %v701 = vsel %vm634, %v688, %v677
        %v703 = vunpack.c.l.s4 1983009808
        %v704 = vunpack.c.0.s8 %v703
        %v705 = vperm.slane %v701, %v704
        %v706 = vrot.slane %v689, 4
        %v707 = vsel %vm634, %v706, %v687
        %v709 = vunpack.c.l.s4 1983009808
        %v710 = vunpack.c.0.s8 %v709
        %v711 = vperm.slane %v707, %v710
        %v712 = vrot.slane %v700, 4
        %v713 = vsel %vm634, %v712, %v694
        %v714 = vrot.slane %v694, 4
        %v715 = vsel %vm634, %v700, %v714
        %v717 = vunpack.c.l.s4 1934713408
        %v718 = vunpack.c.0.s8 %v717
        %v719 = vperm.slane %v713, %v718
        %v721 = vunpack.c.l.s4 1934713408
        %v722 = vunpack.c.0.s8 %v721
        %v723 = vperm.slane %v715, %v722
        %v724 = vrot.slane %v711, 4
        %v725 = vsel %vm634, %v724, %v705
        %v726 = vrot.slane %v705, 4
        %v727 = vsel %vm634, %v711, %v726
        %v729 = vunpack.c.l.s4 1934713408
        %v730 = vunpack.c.0.s8 %v729
        %v731 = vperm.slane %v725, %v730
        %v733 = vunpack.c.l.s4 1934713408
        %v734 = vunpack.c.0.s8 %v733
        %v735 = vperm.slane %v727, %v734
        %v736 = vrot.slane %v731, 4
        %v737 = vsel %vm634, %v736, %v719
        %v738 = vrot.slane %v719, 4
        %v739 = vsel %vm634, %v731, %v738
        %v740 = vrot.slane %v735, 4
        %v741 = vsel %vm634, %v740, %v723
        %v742 = vrot.slane %v723, 4
        %v743 = vsel %vm634, %v735, %v742
        %744 = vrot.lane.b32.xlu0 %v621, 64
        %v745 = vpop.permute.xlu0 %744
        %746 = vrot.lane.b32.xlu0 %v625, 64
        %v747 = vpop.permute.xlu0 %746
        %v750 = vrot.slane %v745, 4
        %v751 = vsel %vm634, 0.0, %v750
        %v753 = vunpack.c.l.s4 1983009808
        %v754 = vunpack.c.0.s8 %v753
        %v755 = vperm.slane %v745, %v754
        %v757 = vunpack.c.l.s4 1983009808
        %v758 = vunpack.c.0.s8 %v757
        %v759 = vperm.slane %v751, %v758
        %v760 = vrot.slane %v747, 4
        %v761 = vsel %vm634, 0.0, %v760
        %v763 = vunpack.c.l.s4 1983009808
        %v764 = vunpack.c.0.s8 %v763
        %v765 = vperm.slane %v747, %v764
        %v767 = vunpack.c.l.s4 1983009808
        %v768 = vunpack.c.0.s8 %v767
        %v769 = vperm.slane %v761, %v768
        %v770 = vrot.slane %v765, 4
        %v771 = vsel %vm634, %v770, %v755
        %v772 = vrot.slane %v755, 4
        %v773 = vsel %vm634, %v765, %v772
        %v775 = vunpack.c.l.s4 1934713408
        %v776 = vunpack.c.0.s8 %v775
        %v777 = vperm.slane %v771, %v776
        %v779 = vunpack.c.l.s4 1934713408
        %v780 = vunpack.c.0.s8 %v779
        %v781 = vperm.slane %v773, %v780
        %v782 = vrot.slane %v769, 4
        %v783 = vsel %vm634, %v782, %v759
        %v784 = vrot.slane %v759, 4
        %v785 = vsel %vm634, %v769, %v784
        %v787 = vunpack.c.l.s4 1934713408
        %v788 = vunpack.c.0.s8 %v787
        %v789 = vperm.slane %v783, %v788
        %v791 = vunpack.c.l.s4 1934713408
        %v792 = vunpack.c.0.s8 %v791
        %v793 = vperm.slane %v785, %v792
        %v794 = vrot.slane %v777, 4
        %v795 = vsel %vm634, 0.0, %v794
        %v796 = vrot.slane %v781, 4
        %v797 = vsel %vm634, 0.0, %v796
        %v798 = vrot.slane %v789, 4
        %v799 = vsel %vm634, 0.0, %v798
        %v800 = vrot.slane %v793, 4
        %v801 = vsel %vm634, 0.0, %v800
        %v802 = vsel %vm634, %v796, %v777
        %v804 = vunpack.c.l.s4 1983009808
        %v805 = vunpack.c.0.s8 %v804
        %v806 = vperm.slane %v802, %v805
        %v807 = vrot.slane %v797, 4
        %v808 = vsel %vm634, %v807, %v795
        %v810 = vunpack.c.l.s4 1983009808
        %v811 = vunpack.c.0.s8 %v810
        %v812 = vperm.slane %v808, %v811
        %v813 = vsel %vm634, %v800, %v789
        %v815 = vunpack.c.l.s4 1983009808
        %v816 = vunpack.c.0.s8 %v815
        %v817 = vperm.slane %v813, %v816
        %v818 = vrot.slane %v801, 4
        %v819 = vsel %vm634, %v818, %v799
        %v821 = vunpack.c.l.s4 1983009808
        %v822 = vunpack.c.0.s8 %v821
        %v823 = vperm.slane %v819, %v822
        %v824 = vrot.slane %v812, 4
        %v825 = vsel %vm634, %v824, %v806
        %v827 = vunpack.c.l.s4 1934713408
        %v828 = vunpack.c.0.s8 %v827
        %v829 = vperm.slane %v825, %v828
        %v830 = vrot.slane %v823, 4
        %v831 = vsel %vm634, %v830, %v817
        %v833 = vunpack.c.l.s4 1934713408
        %v834 = vunpack.c.0.s8 %v833
        %v835 = vperm.slane %v831, %v834
        %v836 = vrot.slane %v835, 4
        %v837 = vsel %vm634, %v836, %v829
        %v838 = vrot.slane %v829, 4
        %v839 = vsel %vm634, %v835, %v838
        %840 = vrot.lane.b32.xlu0 %v621, 32
        %v841 = vpop.permute.xlu0 %840
        %842 = vrot.lane.b32.xlu0 %v625, 32
        %v843 = vpop.permute.xlu0 %842
        %v846 = vrot.slane %v841, 4
        %v847 = vsel %vm634, 0.0, %v846
        %v849 = vunpack.c.l.s4 1983009808
        %v850 = vunpack.c.0.s8 %v849
        %v851 = vperm.slane %v841, %v850
        %v853 = vunpack.c.l.s4 1983009808
        %v854 = vunpack.c.0.s8 %v853
        %v855 = vperm.slane %v847, %v854
        %v856 = vrot.slane %v843, 4
        %v857 = vsel %vm634, 0.0, %v856
        %v859 = vunpack.c.l.s4 1983009808
        %v860 = vunpack.c.0.s8 %v859
        %v861 = vperm.slane %v843, %v860
        %v863 = vunpack.c.l.s4 1983009808
        %v864 = vunpack.c.0.s8 %v863
        %v865 = vperm.slane %v857, %v864
        %v866 = vrot.slane %v861, 4
        %v867 = vsel %vm634, %v866, %v851
        %v868 = vrot.slane %v851, 4
        %v869 = vsel %vm634, %v861, %v868
        %v871 = vunpack.c.l.s4 1934713408
        %v872 = vunpack.c.0.s8 %v871
        %v873 = vperm.slane %v867, %v872
        %v875 = vunpack.c.l.s4 1934713408
        %v876 = vunpack.c.0.s8 %v875
        %v877 = vperm.slane %v869, %v876
        %v878 = vrot.slane %v865, 4
        %v879 = vsel %vm634, %v878, %v855
        %v880 = vrot.slane %v855, 4
        %v881 = vsel %vm634, %v865, %v880
        %v883 = vunpack.c.l.s4 1934713408
        %v884 = vunpack.c.0.s8 %v883
        %v885 = vperm.slane %v879, %v884
        %v887 = vunpack.c.l.s4 1934713408
        %v888 = vunpack.c.0.s8 %v887
        %v889 = vperm.slane %v881, %v888
        %v890 = vrot.slane %v873, 4
        %v891 = vsel %vm634, 0.0, %v890
        %v892 = vrot.slane %v877, 4
        %v893 = vsel %vm634, 0.0, %v892
        %v894 = vrot.slane %v885, 4
        %v895 = vsel %vm634, 0.0, %v894
        %v896 = vrot.slane %v889, 4
        %v897 = vsel %vm634, 0.0, %v896
        %v898 = vsel %vm634, %v892, %v873
        %v900 = vunpack.c.l.s4 1983009808
        %v901 = vunpack.c.0.s8 %v900
        %v902 = vperm.slane %v898, %v901
        %v903 = vrot.slane %v893, 4
        %v904 = vsel %vm634, %v903, %v891
        %v906 = vunpack.c.l.s4 1983009808
        %v907 = vunpack.c.0.s8 %v906
        %v908 = vperm.slane %v904, %v907
        %v909 = vsel %vm634, %v896, %v885
        %v911 = vunpack.c.l.s4 1983009808
        %v912 = vunpack.c.0.s8 %v911
        %v913 = vperm.slane %v909, %v912
        %v914 = vrot.slane %v897, 4
        %v915 = vsel %vm634, %v914, %v895
        %v917 = vunpack.c.l.s4 1983009808
        %v918 = vunpack.c.0.s8 %v917
        %v919 = vperm.slane %v915, %v918
        %v920 = vrot.slane %v908, 4
        %v921 = vsel %vm634, %v920, %v902
        %v923 = vunpack.c.l.s4 1934713408
        %v924 = vunpack.c.0.s8 %v923
        %v925 = vperm.slane %v921, %v924
        %v926 = vrot.slane %v919, 4
        %v927 = vsel %vm634, %v926, %v913
        %v929 = vunpack.c.l.s4 1934713408
        %v930 = vunpack.c.0.s8 %v929
        %v931 = vperm.slane %v927, %v930
        %v932 = vrot.slane %v931, 4
        %v933 = vsel %vm634, %v932, %v925
        %v934 = vrot.slane %v925, 4
        %v935 = vsel %vm634, %v931, %v934
        %940 = vrot.lane.b32.xlu0 %v737, 120
        %v941 = vpop.permute.xlu0 %940
        %942 = vrot.lane.b32.xlu0 %v739, 120
        %v943 = vpop.permute.xlu0 %942
        %944 = vrot.lane.b32.xlu0 %v741, 120
        %v945 = vpop.permute.xlu0 %944
        %946 = vrot.lane.b32.xlu0 %v743, 120
        %v947 = vpop.permute.xlu0 %946
        %952 = vrot.lane.b32.xlu0 %v737, 8
        %v953 = vpop.permute.xlu0 %952
        %954 = vrot.lane.b32.xlu0 %v739, 8
        %v955 = vpop.permute.xlu0 %954
        %956 = vrot.lane.b32.xlu0 %v741, 8
        %v957 = vpop.permute.xlu0 %956
        %958 = vrot.lane.b32.xlu0 %v743, 8
        %v959 = vpop.permute.xlu0 %958
        %vm964 = vcmask 64512
        %v965 = vsel %vm964, %v941, %v953
        %v966 = vsel %vm964, %v943, %v955
        %v967 = vsel %vm964, %v945, %v957
        %v968 = vsel %vm964, %v947, %v959
        %v969 = vmul.f32 %v737, %v563
        %v970 = vmul.f32 %v739, %v563
        %v971 = vmul.f32 %v741, %v563
        %v972 = vmul.f32 %v743, %v563
        %v973 = vmul.f32 %v965, %v564
        %v974 = vmul.f32 %v966, %v564
        %v975 = vmul.f32 %v967, %v564
        %v976 = vmul.f32 %v968, %v564
        %v977 = vadd.f32 %v969, %v973
        %v978 = vadd.f32 %v970, %v974
        %v979 = vadd.f32 %v971, %v975
        %v980 = vadd.f32 %v972, %v976
        %983 = vrot.lane.b32.xlu0 %v837, 120
        %v984 = vpop.permute.xlu0 %983
        %985 = vrot.lane.b32.xlu0 %v839, 120
        %v986 = vpop.permute.xlu0 %985
        %989 = vrot.lane.b32.xlu0 %v837, 8
        %v990 = vpop.permute.xlu0 %989
        %991 = vrot.lane.b32.xlu0 %v839, 8
        %v992 = vpop.permute.xlu0 %991
        %v995 = vsel %vm964, %v984, %v990
        %v996 = vsel %vm964, %v986, %v992
        %v997 = vmul.f32 %v837, %v563
        %v998 = vmul.f32 %v839, %v563
        %v999 = vmul.f32 %v995, %v564
        %v1000 = vmul.f32 %v996, %v564
        %v1001 = vadd.f32 %v997, %v999
        %v1002 = vadd.f32 %v998, %v1000
        %vm1003 = vcmask 130048
        %v1005 = vsel %vm1003, %v977, 0
        %v1008 = vsel %vm1003, %v1001, 0
        %1010 = vmatpush.xpose.msra.mxu0 0.0
        %1011 = vmatpush.xpose.msra.mxu0 0.0
        %1012 = vmatpush.xpose.msra.mxu0 0.0
        %1013 = vmatpush.xpose.msra.mxu0 0.0
        %1014 = vmatpush.xpose.msra.mxu0 0.0
        %1015 = vmatpush.xpose.msra.mxu0 0.0
        %1016 = vmatpush.xpose.msra.mxu0 0.0
        %1017 = vmatpush.xpose.msra.mxu0 0.0
        %1018 = vmatpush.xpose.msra.mxu0 0.0
        %1019 = vmatpush.xpose.msra.mxu0 0.0
        %1020 = vmatpush.xpose.msra.mxu0 0.0
        %1021 = vmatpush.xpose.msra.mxu0 0.0
        %1022 = vmatpush.xpose.msra.mxu0 0.0
        %1023 = vmatpush.xpose.msra.mxu0 0.0
        %1024 = vmatpush.xpose.msra.mxu0 0.0
        %1025 = vmatpush.xpose.msra.mxu0 %v1008
        %1026 = vmatmul.f32.gmra.mxu0 %v1005
        %v1027 = vpop.f32.mrf.mxu0
        %v1028 = vadd.f32 0.0, %v1027
        %1029 = vdwg.mxu0
        %v1031 = vsel %vm1003, %v978, 0
        %1033 = vmatpush.xpose.msra.mxu0 0.0
        %1034 = vmatpush.xpose.msra.mxu0 0.0
        %1035 = vmatpush.xpose.msra.mxu0 0.0
        %1036 = vmatpush.xpose.msra.mxu0 0.0
        %1037 = vmatpush.xpose.msra.mxu0 0.0
        %1038 = vmatpush.xpose.msra.mxu0 0.0
        %1039 = vmatpush.xpose.msra.mxu0 0.0
        %1040 = vmatpush.xpose.msra.mxu0 0.0
        %1041 = vmatpush.xpose.msra.mxu0 0.0
        %1042 = vmatpush.xpose.msra.mxu0 0.0
        %1043 = vmatpush.xpose.msra.mxu0 0.0
        %1044 = vmatpush.xpose.msra.mxu0 0.0
        %1045 = vmatpush.xpose.msra.mxu0 0.0
        %1046 = vmatpush.xpose.msra.mxu0 0.0
        %1047 = vmatpush.xpose.msra.mxu0 0.0
        %1048 = vmatpush.xpose.msra.mxu0 %v1008
        %1049 = vmatmul.f32.gmra.mxu0 %v1031
        %v1050 = vpop.f32.mrf.mxu0
        %v1051 = vadd.f32 0.0, %v1050
        %1052 = vdwg.mxu0
        %v1054 = vsel %vm1003, %v979, 0
        %v1057 = vsel %vm1003, %v1002, 0
        %1059 = vmatpush.xpose.msra.mxu0 0.0
        %1060 = vmatpush.xpose.msra.mxu0 0.0
        %1061 = vmatpush.xpose.msra.mxu0 0.0
        %1062 = vmatpush.xpose.msra.mxu0 0.0
        %1063 = vmatpush.xpose.msra.mxu0 0.0
        %1064 = vmatpush.xpose.msra.mxu0 0.0
        %1065 = vmatpush.xpose.msra.mxu0 0.0
        %1066 = vmatpush.xpose.msra.mxu0 0.0
        %1067 = vmatpush.xpose.msra.mxu0 0.0
        %1068 = vmatpush.xpose.msra.mxu0 0.0
        %1069 = vmatpush.xpose.msra.mxu0 0.0
        %1070 = vmatpush.xpose.msra.mxu0 0.0
        %1071 = vmatpush.xpose.msra.mxu0 0.0
        %1072 = vmatpush.xpose.msra.mxu0 0.0
        %1073 = vmatpush.xpose.msra.mxu0 0.0
        %1074 = vmatpush.xpose.msra.mxu0 %v1057
        %1075 = vmatmul.f32.gmra.mxu0 %v1054
        %v1076 = vpop.f32.mrf.mxu0
        %v1077 = vadd.f32 0.0, %v1076
        %1078 = vdwg.mxu0
        %v1080 = vsel %vm1003, %v980, 0
        %1082 = vmatpush.xpose.msra.mxu0 0.0
        %1083 = vmatpush.xpose.msra.mxu0 0.0
        %1084 = vmatpush.xpose.msra.mxu0 0.0
        %1085 = vmatpush.xpose.msra.mxu0 0.0
        %1086 = vmatpush.xpose.msra.mxu0 0.0
        %1087 = vmatpush.xpose.msra.mxu0 0.0
        %1088 = vmatpush.xpose.msra.mxu0 0.0
        %1089 = vmatpush.xpose.msra.mxu0 0.0
        %1090 = vmatpush.xpose.msra.mxu0 0.0
        %1091 = vmatpush.xpose.msra.mxu0 0.0
        %1092 = vmatpush.xpose.msra.mxu0 0.0
        %1093 = vmatpush.xpose.msra.mxu0 0.0
        %1094 = vmatpush.xpose.msra.mxu0 0.0
        %1095 = vmatpush.xpose.msra.mxu0 0.0
        %1096 = vmatpush.xpose.msra.mxu0 0.0
        %1097 = vmatpush.xpose.msra.mxu0 %v1057
        %1098 = vmatmul.f32.gmra.mxu0 %v1080
        %v1099 = vpop.f32.mrf.mxu0
        %v1100 = vadd.f32 0.0, %v1099
        %1101 = vdwg.mxu0
        %v1102 = vmul.f32 %v1028, 0.25
        %v1103 = vmul.f32 %v1051, 0.25
        %v1104 = vmul.f32 %v1077, 0.25
        %v1105 = vmul.f32 %v1100, 0.25
        %v1106 = vadd.f32 %v1102, %v562
        %v1107 = vadd.f32 %v1103, %v562
        %v1108 = vadd.f32 %v1104, %v562
        %v1109 = vadd.f32 %v1105, %v562
        %v1110 = vsel %vm964, %v1106, -inf
        %1111 = vmax.xlane.f32.xlu0 %v1110
        %v1112 = vpop.xlane.xlu0 %1111
        %v1113 = vsel %vm964, %v1107, -inf
        %1114 = vmax.xlane.f32.xlu0 %v1113
        %v1115 = vpop.xlane.xlu0 %1114
        %v1116 = vsel %vm964, %v1108, -inf
        %1117 = vmax.xlane.f32.xlu0 %v1116
        %v1118 = vpop.xlane.xlu0 %1117
        %v1119 = vsel %vm964, %v1109, -inf
        %1120 = vmax.xlane.f32.xlu0 %v1119
        %v1121 = vpop.xlane.xlu0 %1120
        %v1122 = vsub.f32 %v1106, %v1112
        %v1123 = vsub.f32 %v1107, %v1115
        %v1124 = vsub.f32 %v1108, %v1118
        %v1125 = vsub.f32 %v1109, %v1121
        %v1126 = vmul.f32 %v1122, 1.442695
        %v1127 = vpow.pop %v1126
        %v1128 = vmul.f32 %v1123, 1.442695
        %v1129 = vpow.pop %v1128
        %v1130 = vmul.f32 %v1124, 1.442695
        %v1131 = vpow.pop %v1130
        %v1132 = vmul.f32 %v1125, 1.442695
        %v1133 = vpow.pop %v1132
        %v1134 = vsel %vm964, %v1127, 0.0
        %1135 = vadd.xlane.f32.xlu0 %v1134
        %v1136 = vpop.xlane.xlu0 %1135
        %v1137 = vsel %vm964, %v1129, 0.0
        %1138 = vadd.xlane.f32.xlu0 %v1137
        %v1139 = vpop.xlane.xlu0 %1138
        %v1140 = vsel %vm964, %v1131, 0.0
        %1141 = vadd.xlane.f32.xlu0 %v1140
        %v1142 = vpop.xlane.xlu0 %1141
        %v1143 = vsel %vm964, %v1133, 0.0
        %1144 = vadd.xlane.f32.xlu0 %v1143
        %v1145 = vpop.xlane.xlu0 %1144
        %v1146 = vrcp.pop %v1136
        %v1147 = vmul.f32 %v1136, %v1146
        %v1148 = vsub.f32 1.0, %v1147
        %v1149 = vmul.f32 %v1146, %v1148
        %v1150 = vadd.f32 %v1146, %v1149
        %vm1151 = vweird.f32 %v1136
        %vm1152 = vweird.f32 %v1146
        %vm1153 = vmor %vm1151, %vm1152
        %v1154 = vsel %vm1153, %v1146, %v1150
        %v1155 = vand.u32 2147483647, %v1136
        %vm1156 = vcmp.eq.f32.partialorder %v1155, 8.507059e+37
        %v1157 = vand.u32 %v1136, 2147483648
        %v1158 = vor.u32 1.1754944e-38, %v1157
        %v1159 = vsel %vm1156, %v1158, %v1154
        %v1160 = vrcp.pop %v1139
        %v1161 = vmul.f32 %v1139, %v1160
        %v1162 = vsub.f32 1.0, %v1161
        %v1163 = vmul.f32 %v1160, %v1162
        %v1164 = vadd.f32 %v1160, %v1163
        %vm1165 = vweird.f32 %v1139
        %vm1166 = vweird.f32 %v1160
        %vm1167 = vmor %vm1165, %vm1166
        %v1168 = vsel %vm1167, %v1160, %v1164
        %v1169 = vand.u32 2147483647, %v1139
        %vm1170 = vcmp.eq.f32.partialorder %v1169, 8.507059e+37
        %v1171 = vand.u32 %v1139, 2147483648
        %v1172 = vor.u32 1.1754944e-38, %v1171
        %v1173 = vsel %vm1170, %v1172, %v1168
        %v1174 = vrcp.pop %v1142
        %v1175 = vmul.f32 %v1142, %v1174
        %v1176 = vsub.f32 1.0, %v1175
        %v1177 = vmul.f32 %v1174, %v1176
        %v1178 = vadd.f32 %v1174, %v1177
        %vm1179 = vweird.f32 %v1142
        %vm1180 = vweird.f32 %v1174
        %vm1181 = vmor %vm1179, %vm1180
        %v1182 = vsel %vm1181, %v1174, %v1178
        %v1183 = vand.u32 2147483647, %v1142
        %vm1184 = vcmp.eq.f32.partialorder %v1183, 8.507059e+37
        %v1185 = vand.u32 %v1142, 2147483648
        %v1186 = vor.u32 1.1754944e-38, %v1185
        %v1187 = vsel %vm1184, %v1186, %v1182
        %v1188 = vrcp.pop %v1145
        %v1189 = vmul.f32 %v1145, %v1188
        %v1190 = vsub.f32 1.0, %v1189
        %v1191 = vmul.f32 %v1188, %v1190
        %v1192 = vadd.f32 %v1188, %v1191
        %vm1193 = vweird.f32 %v1145
        %vm1194 = vweird.f32 %v1188
        %vm1195 = vmor %vm1193, %vm1194
        %v1196 = vsel %vm1195, %v1188, %v1192
        %v1197 = vand.u32 2147483647, %v1145
        %vm1198 = vcmp.eq.f32.partialorder %v1197, 8.507059e+37
        %v1199 = vand.u32 %v1145, 2147483648
        %v1200 = vor.u32 1.1754944e-38, %v1199
        %v1201 = vsel %vm1198, %v1200, %v1196
        %v1202 = vmul.f32 %v1127, %v1159
        %v1203 = vmul.f32 %v1129, %v1173
        %v1204 = vmul.f32 %v1131, %v1187
        %v1205 = vmul.f32 %v1133, %v1201
        %v1207 = vsel %vm964, %v1202, 0
        %1209 = vmatpush.msra.mxu0 0.0
        %1210 = vmatpush.msra.mxu0 0.0
        %1211 = vmatpush.msra.mxu0 0.0
        %1212 = vmatpush.msra.mxu0 0.0
        %1213 = vmatpush.msra.mxu0 0.0
        %1214 = vmatpush.msra.mxu0 0.0
        %1215 = vmatpush.msra.mxu0 0.0
        %1216 = vmatpush.msra.mxu0 0.0
        %1217 = vmatpush.msra.mxu0 0.0
        %1218 = vmatpush.msra.mxu0 0.0
        %1219 = vmatpush.msra.mxu0 0.0
        %1220 = vmatpush.msra.mxu0 0.0
        %1221 = vmatpush.msra.mxu0 0.0
        %1222 = vmatpush.msra.mxu0 0.0
        %1223 = vmatpush.msra.mxu0 0.0
        %1224 = vmatpush.msra.mxu0 %v933
        %1225 = vmatmul.f32.gmra.mxu0 %v1207
        %v1226 = vpop.f32.mrf.mxu0
        %v1227 = vadd.f32 0.0, %v1226
        %1228 = vdwg.mxu0
        %v1230 = vsel %vm964, %v1203, 0
        %1232 = vmatpush.msra.mxu0 0.0
        %1233 = vmatpush.msra.mxu0 0.0
        %1234 = vmatpush.msra.mxu0 0.0
        %1235 = vmatpush.msra.mxu0 0.0
        %1236 = vmatpush.msra.mxu0 0.0
        %1237 = vmatpush.msra.mxu0 0.0
        %1238 = vmatpush.msra.mxu0 0.0
        %1239 = vmatpush.msra.mxu0 0.0
        %1240 = vmatpush.msra.mxu0 0.0
        %1241 = vmatpush.msra.mxu0 0.0
        %1242 = vmatpush.msra.mxu0 0.0
        %1243 = vmatpush.msra.mxu0 0.0
        %1244 = vmatpush.msra.mxu0 0.0
        %1245 = vmatpush.msra.mxu0 0.0
        %1246 = vmatpush.msra.mxu0 0.0
        %1247 = vmatpush.msra.mxu0 %v933
        %1248 = vmatmul.f32.gmra.mxu0 %v1230
        %v1249 = vpop.f32.mrf.mxu0
        %v1250 = vadd.f32 0.0, %v1249
        %1251 = vdwg.mxu0
        %v1253 = vsel %vm964, %v1204, 0
        %1255 = vmatpush.msra.mxu0 0.0
        %1256 = vmatpush.msra.mxu0 0.0
        %1257 = vmatpush.msra.mxu0 0.0
        %1258 = vmatpush.msra.mxu0 0.0
        %1259 = vmatpush.msra.mxu0 0.0
        %1260 = vmatpush.msra.mxu0 0.0
        %1261 = vmatpush.msra.mxu0 0.0
        %1262 = vmatpush.msra.mxu0 0.0
        %1263 = vmatpush.msra.mxu0 0.0
        %1264 = vmatpush.msra.mxu0 0.0
        %1265 = vmatpush.msra.mxu0 0.0
        %1266 = vmatpush.msra.mxu0 0.0
        %1267 = vmatpush.msra.mxu0 0.0
        %1268 = vmatpush.msra.mxu0 0.0
        %1269 = vmatpush.msra.mxu0 0.0
        %1270 = vmatpush.msra.mxu0 %v935
        %1271 = vmatmul.f32.gmra.mxu0 %v1253
        %v1272 = vpop.f32.mrf.mxu0
        %v1273 = vadd.f32 0.0, %v1272
        %1274 = vdwg.mxu0
        %v1276 = vsel %vm964, %v1205, 0
        %1278 = vmatpush.msra.mxu0 0.0
        %1279 = vmatpush.msra.mxu0 0.0
        %1280 = vmatpush.msra.mxu0 0.0
        %1281 = vmatpush.msra.mxu0 0.0
        %1282 = vmatpush.msra.mxu0 0.0
        %1283 = vmatpush.msra.mxu0 0.0
        %1284 = vmatpush.msra.mxu0 0.0
        %1285 = vmatpush.msra.mxu0 0.0
        %1286 = vmatpush.msra.mxu0 0.0
        %1287 = vmatpush.msra.mxu0 0.0
        %1288 = vmatpush.msra.mxu0 0.0
        %1289 = vmatpush.msra.mxu0 0.0
        %1290 = vmatpush.msra.mxu0 0.0
        %1291 = vmatpush.msra.mxu0 0.0
        %1292 = vmatpush.msra.mxu0 0.0
        %1293 = vmatpush.msra.mxu0 %v935
        %1294 = vmatmul.f32.gmra.mxu0 %v1276
        %v1295 = vpop.f32.mrf.mxu0
        %v1296 = vadd.f32 0.0, %v1295
        %1297 = vdwg.mxu0
        %v1298 = vrot.slane %v1273, 4
        %v1299 = vsel %vm634, %v1298, %v1227
        %v1300 = vrot.slane %v1227, 4
        %v1301 = vsel %vm634, %v1273, %v1300
        %v1303 = vunpack.c.l.s4 1983009808
        %v1304 = vunpack.c.0.s8 %v1303
        %v1305 = vperm.slane %v1299, %v1304
        %v1307 = vunpack.c.l.s4 1983009808
        %v1308 = vunpack.c.0.s8 %v1307
        %v1309 = vperm.slane %v1301, %v1308
        %v1310 = vrot.slane %v1296, 4
        %v1311 = vsel %vm634, %v1310, %v1250
        %v1312 = vrot.slane %v1250, 4
        %v1313 = vsel %vm634, %v1296, %v1312
        %v1315 = vunpack.c.l.s4 1983009808
        %v1316 = vunpack.c.0.s8 %v1315
        %v1317 = vperm.slane %v1311, %v1316
        %v1319 = vunpack.c.l.s4 1983009808
        %v1320 = vunpack.c.0.s8 %v1319
        %v1321 = vperm.slane %v1313, %v1320
        %v1322 = vrot.slane %v1317, 4
        %v1323 = vsel %vm634, %v1322, %v1305
        %v1324 = vrot.slane %v1305, 4
        %v1325 = vsel %vm634, %v1317, %v1324
        %v1327 = vunpack.c.l.s4 1934713408
        %v1328 = vunpack.c.0.s8 %v1327
        %v1329 = vperm.slane %v1323, %v1328
        %v1331 = vunpack.c.l.s4 1934713408
        %v1332 = vunpack.c.0.s8 %v1331
        %v1333 = vperm.slane %v1325, %v1332
        %v1334 = vrot.slane %v1321, 4
        %v1335 = vsel %vm634, %v1334, %v1309
        %v1336 = vrot.slane %v1309, 4
        %v1337 = vsel %vm634, %v1321, %v1336
        %v1339 = vunpack.c.l.s4 1934713408
        %v1340 = vunpack.c.0.s8 %v1339
        %v1341 = vperm.slane %v1335, %v1340
        %v1343 = vunpack.c.l.s4 1934713408
        %v1344 = vunpack.c.0.s8 %v1343
        %v1345 = vperm.slane %v1337, %v1344
        %v1346 = vrot.slane %v1329, 4
        %v1347 = vsel %vm634, 0.0, %v1346
        %v1348 = vrot.slane %v1333, 4
        %v1349 = vsel %vm634, 0.0, %v1348
        %v1350 = vrot.slane %v1341, 4
        %v1351 = vsel %vm634, 0.0, %v1350
        %v1352 = vrot.slane %v1345, 4
        %v1353 = vsel %vm634, 0.0, %v1352
        %v1354 = vsel %vm634, %v1348, %v1329
        %v1356 = vunpack.c.l.s4 1983009808
        %v1357 = vunpack.c.0.s8 %v1356
        %v1358 = vperm.slane %v1354, %v1357
        %v1359 = vrot.slane %v1349, 4
        %v1360 = vsel %vm634, %v1359, %v1347
        %v1362 = vunpack.c.l.s4 1983009808
        %v1363 = vunpack.c.0.s8 %v1362
        %v1364 = vperm.slane %v1360, %v1363
        %v1365 = vsel %vm634, %v1352, %v1341
        %v1367 = vunpack.c.l.s4 1983009808
        %v1368 = vunpack.c.0.s8 %v1367
        %v1369 = vperm.slane %v1365, %v1368
        %v1370 = vrot.slane %v1353, 4
        %v1371 = vsel %vm634, %v1370, %v1351
        %v1373 = vunpack.c.l.s4 1983009808
        %v1374 = vunpack.c.0.s8 %v1373
        %v1375 = vperm.slane %v1371, %v1374
        %v1376 = vrot.slane %v1364, 4
        %v1377 = vsel %vm634, %v1376, %v1358
        %v1378 = vrot.slane %v1358, 4
        %v1379 = vsel %vm634, %v1364, %v1378
        %v1381 = vunpack.c.l.s4 1934713408
        %v1382 = vunpack.c.0.s8 %v1381
        %v1383 = vperm.slane %v1377, %v1382
        %v1385 = vunpack.c.l.s4 1934713408
        %v1386 = vunpack.c.0.s8 %v1385
        %v1387 = vperm.slane %v1379, %v1386
        %v1388 = vrot.slane %v1375, 4
        %v1389 = vsel %vm634, %v1388, %v1369
        %v1390 = vrot.slane %v1369, 4
        %v1391 = vsel %vm634, %v1375, %v1390
        %v1393 = vunpack.c.l.s4 1934713408
        %v1394 = vunpack.c.0.s8 %v1393
        %v1395 = vperm.slane %v1389, %v1394
        %v1397 = vunpack.c.l.s4 1934713408
        %v1398 = vunpack.c.0.s8 %v1397
        %v1399 = vperm.slane %v1391, %v1398
        %v1400 = vrot.slane %v1395, 4
        %v1401 = vsel %vm634, %v1400, %v1383
        %v1402 = vrot.slane %v1383, 4
        %v1403 = vsel %vm634, %v1395, %v1402
        %v1404 = vrot.slane %v1399, 4
        %v1405 = vsel %vm634, %v1404, %v1387
        %v1406 = vrot.slane %v1387, 4
        %v1407 = vsel %vm634, %v1399, %v1406
        %1409 = vrot.lane.b32.xlu0 %v1403, 16
        %v1410 = vpop.permute.xlu0 %1409
        %1413 = vrot.lane.b32.xlu0 %v1405, 32
        %v1414 = vpop.permute.xlu0 %1413
        %1417 = vrot.lane.b32.xlu0 %v1407, 48
        %v1418 = vpop.permute.xlu0 %1417
        %v1420 = vsel %vm1003, %v1401, %v1410
        %v1421 = vsel %vm567, %v1420, %v1414
        %vm1422 = vcmask 392192
        %v1423 = vsel %vm1422, %v1421, %v1418
        %v1424 = vld [vmem:[%s539] sm:$0xff]
        %v1425 = vld [vmem:[%s539 + $0x8] sm:$0xff]
        %v1426 = vld [vmem:[%s539 + $0x10] sm:$0xff]
        %v1427 = vld [vmem:[%s539 + $0x18] sm:$0xff]
        %v1428 = vld [vmem:[%s539 + $0x20] sm:$0xff]
        %v1429 = vld [vmem:[%s539 + $0x28] sm:$0xff]
        %v1430 = vld [vmem:[%s539 + $0x30] sm:$0xff]
        %v1431 = vld [vmem:[%s539 + $0x38] sm:$0xff]
        %vm1432 = vcmask 523264
        %v1434 = vsel %vm1432, %v1423, 0
        %1436 = vmatpush.msra.mxu0 0.0
        %1437 = vmatpush.msra.mxu0 0.0
        %1438 = vmatpush.msra.mxu0 0.0
        %1439 = vmatpush.msra.mxu0 0.0
        %1440 = vmatpush.msra.mxu0 0.0
        %1441 = vmatpush.msra.mxu0 0.0
        %1442 = vmatpush.msra.mxu0 0.0
        %1443 = vmatpush.msra.mxu0 0.0
        %1444 = vmatpush.msra.mxu0 %v1431
        %1445 = vmatpush.msra.mxu0 %v1430
        %1446 = vmatpush.msra.mxu0 %v1429
        %1447 = vmatpush.msra.mxu0 %v1428
        %1448 = vmatpush.msra.mxu0 %v1427
        %1449 = vmatpush.msra.mxu0 %v1426
        %1450 = vmatpush.msra.mxu0 %v1425
        %1451 = vmatpush.msra.mxu0 %v1424
        %1452 = vmatmul.f32.gmra.mxu0 %v1434
        %v1453 = vpop.f32.mrf.mxu0
        %v1454 = vadd.f32 0.0, %v1453
        %1455 = vdwg.mxu0
        %v1456 = vadd.f32 %v561, %v1454
        %v1457 = vld [vmem:[%s542] sm:$0x1]
        %v1458 = vmul.f32 %v1456, %v1456
        %v1459 = vsel %vm567, %v1458, 0.0
        %1460 = vadd.xlane.f32.xlu0 %v1459
        %v1461 = vpop.xlane.xlu0 %1460
        %v1462 = vmul.f32 %v1461, %v577
        %v1463 = vadd.f32 %v1462, 1e-06
        %v1464 = vrsqrt.pop %v1463
        %v1465 = vmul.f32 %v1464, %v1463
        %v1466 = vmul.f32 %v1465, %v1464
        %v1467 = vmul.f32 0.5, %v1466
        %v1468 = vsub.f32 1.5, %v1467
        %v1469 = vmul.f32 %v1464, %v1468
        %vm1470 = vweird.f32 %v1463
        %vm1471 = vweird.f32 %v1464
        %vm1472 = vmor %vm1470, %vm1471
        %v1473 = vsel %vm1472, %v1464, %v1469
        %v1474 = vmul.f32 %v1456, %v1473
        %v1475 = vadd.f32 %v1457, 1.0
        %v1477 = vperm.slane %v1475, 0
        %v1479 = vmul.f32 %v1474, %v1477
        %v1480 = vld [vmem:[%s547] sm:$0xff]
        %v1481 = vld [vmem:[%s547 + $0x8] sm:$0xff]
        %v1482 = vld [vmem:[%s547 + $0x10] sm:$0xff]
        %v1483 = vld [vmem:[%s547 + $0x18] sm:$0xff]
        %v1485 = vsel %vm567, %v1479, 0
        %1487 = vmatpush.msra.mxu0 0.0
        %1488 = vmatpush.msra.mxu0 0.0
        %1489 = vmatpush.msra.mxu0 0.0
        %1490 = vmatpush.msra.mxu0 0.0
        %1491 = vmatpush.msra.mxu0 0.0
        %1492 = vmatpush.msra.mxu0 0.0
        %1493 = vmatpush.msra.mxu0 0.0
        %1494 = vmatpush.msra.mxu0 0.0
        %1495 = vmatpush.msra.mxu0 0.0
        %1496 = vmatpush.msra.mxu0 0.0
        %1497 = vmatpush.msra.mxu0 0.0
        %1498 = vmatpush.msra.mxu0 0.0
        %1499 = vmatpush.msra.mxu0 %v1483
        %1500 = vmatpush.msra.mxu0 %v1482
        %1501 = vmatpush.msra.mxu0 %v1481
        %1502 = vmatpush.msra.mxu0 %v1480
        %1503 = vmatmul.f32.gmra.mxu0 %v1485
        %v1504 = vpop.f32.mrf.mxu0
        %v1505 = vadd.f32 0.0, %v1504
        %1506 = vdwg.mxu0
        %v1507 = vmul.f32 %v1505, %v1505
        %v1508 = vmul.f32 %v1505, %v1507
        %v1509 = vmul.f32 %v1508, 0.044715
        %v1510 = vadd.f32 %v1505, %v1509
        %v1511 = vmul.f32 %v1510, 0.7978846
        %v1512 = vtanh.pop %v1511
        %v1513 = vadd.f32 %v1512, 1.0
        %v1514 = vmul.f32 %v1513, 0.5
        %v1515 = vmul.f32 %v1505, %v1514
        %1517 = vrot.lane.b32.xlu0 %v1505, 64
        %v1518 = vpop.permute.xlu0 %1517
        %v1520 = vmul.f32 %v1515, %v1518
        %v1521 = vld [vmem:[%s552] sm:$0xff]
        %v1522 = vld [vmem:[%s552 + $0x8] sm:$0xff]
        %v1523 = vld [vmem:[%s552 + $0x10] sm:$0xff]
        %v1524 = vld [vmem:[%s552 + $0x18] sm:$0xff]
        %v1525 = vld [vmem:[%s552 + $0x20] sm:$0xff]
        %v1526 = vld [vmem:[%s552 + $0x28] sm:$0xff]
        %v1527 = vld [vmem:[%s552 + $0x30] sm:$0xff]
        %v1528 = vld [vmem:[%s552 + $0x38] sm:$0xff]
        %v1530 = vsel %vm1432, %v1520, 0
        %1532 = vmatpush.msra.mxu0 0.0
        %1533 = vmatpush.msra.mxu0 0.0
        %1534 = vmatpush.msra.mxu0 0.0
        %1535 = vmatpush.msra.mxu0 0.0
        %1536 = vmatpush.msra.mxu0 0.0
        %1537 = vmatpush.msra.mxu0 0.0
        %1538 = vmatpush.msra.mxu0 0.0
        %1539 = vmatpush.msra.mxu0 0.0
        %1540 = vmatpush.msra.mxu0 %v1528
        %1541 = vmatpush.msra.mxu0 %v1527
        %1542 = vmatpush.msra.mxu0 %v1526
        %1543 = vmatpush.msra.mxu0 %v1525
        %1544 = vmatpush.msra.mxu0 %v1524
        %1545 = vmatpush.msra.mxu0 %v1523
        %1546 = vmatpush.msra.mxu0 %v1522
        %1547 = vmatpush.msra.mxu0 %v1521
        %1548 = vmatmul.f32.gmra.mxu0 %v1530
        %v1549 = vpop.f32.mrf.mxu0
        %v1550 = vadd.f32 0.0, %v1549
        %1551 = vdwg.mxu0
        %v1552 = vadd.f32 %v1456, %v1550
        %p1553 = scmp.lt.s32.totalorder %s30, 1
        // Predicated region
        $region69: #{tpu_custom_call.1} parent=63 // pred_check
          %p1554 = pneg %p1553
        $region70: #{tpu_custom_call.1} parent=63 // pred_check_branch
          %1556 = sbr.rel (%p1554) target = $region72
        $region71: #{tpu_custom_call.1} parent=63 // pred_region
          %1557 = vst.msk [vmem:[%s510] sm:$0xff] %vm567, %v1552
        $region72: #{tpu_custom_call.1} parent=63 // pred_fallthru
          _
        %p1558 = scmp.eq.s32.totalorder %s30, 1
        // Predicated region
        $region73: #{tpu_custom_call.1} parent=63 // pred_check
          %p1559 = pneg %p1558
        $region74: #{tpu_custom_call.1} parent=63 // pred_check_branch
          %1561 = sbr.rel (%p1559) target = $region76
        $region75: #{tpu_custom_call.1} parent=63 // pred_region
          %v1562 = vld [vmem:[%s10] sm:$0x1]
          %v1563 = vmul.f32 %v1552, %v1552
          %v1564 = vsel %vm567, %v1563, 0.0
          %1565 = vadd.xlane.f32.xlu0 %v1564
          %v1566 = vpop.xlane.xlu0 %1565
          %v1567 = vmul.f32 %v1566, %v577
          %v1568 = vadd.f32 %v1567, 1e-06
          %v1569 = vrsqrt.pop %v1568
          %v1570 = vmul.f32 %v1569, %v1568
          %v1571 = vmul.f32 %v1570, %v1569
          %v1572 = vmul.f32 0.5, %v1571
          %v1573 = vsub.f32 1.5, %v1572
          %v1574 = vmul.f32 %v1569, %v1573
          %vm1575 = vweird.f32 %v1568
          %vm1576 = vweird.f32 %v1569
          %vm1577 = vmor %vm1575, %vm1576
          %v1578 = vsel %vm1577, %v1569, %v1574
          %v1579 = vmul.f32 %v1552, %v1578
          %v1580 = vadd.f32 %v1562, 1.0
          %v1582 = vperm.slane %v1580, 0
          %v1584 = vmul.f32 %v1579, %v1582
          %1585 = vst.msk [vmem:[%s510] sm:$0xff] %vm567, %v1584
        $region76: #{tpu_custom_call.1} parent=63 // pred_fallthru
          _
        %s1586 = sand.u32 %s326, 1
        %s1587 = scalar_lea.sflag [#allocation3], %s1586
        %s1588 = sand.u32 %s326, 1
        %s1589 = smul.addr %s1588, 8
        %s1590 = scalar_lea.vmem [#allocation2], %s1589
        // Predicated region
        $region77: #{tpu_custom_call.1} parent=63 // pred_check
          %p1591 = pneg %p336
        $region78: #{tpu_custom_call.1} parent=63 // pred_check_branch
          %1593 = sbr.rel (%p1591) target = $region80
        $region79: #{tpu_custom_call.1} parent=63 // pred_region
          %1595 = vsyncadd %s1587, 0
          %s1596 = smul.addr %s29, 8
          %s1597 = scalar_lea.hbm %s11, %s1596
          %s1599 = sshll.u32 %s1590, 4
          %s1600 = int_to_ptr.vmem [resolvable:$true] %s1599
          %s1601 = sshll.u32 %s1597, 4
          %s1602 = int_to_ptr.hbm [resolvable:$true] %s1601
          %1604 = dma.vmem_to_hbm [thread:$0]  %s1600, 128, %s1602, %s1587
        $region80: #{tpu_custom_call.1} parent=63 // pred_fallthru
          _
      $region64: #{tpu_custom_call.1} parent=5 // pred_fallthru
        _
      %p1605 = scmp.le.s32.totalorder 2, %s20
      // Predicated region
      $region81: #{tpu_custom_call.1} parent=5 // pred_check
        %p1606 = pneg %p1605
      $region82: #{tpu_custom_call.1} parent=5 // pred_check_branch
        %1608 = sbr.rel (%p1606) target = $region84
      $region83: #{tpu_custom_call.1} parent=5 // pred_region
        %s1609 = ssub.s32 %s20, 2
        // Predicated region
        $region85: #{tpu_custom_call.1} parent=83 // pred_check
          %p1610 = pneg %p342
        $region86: #{tpu_custom_call.1} parent=83 // pred_check_branch
          %1612 = sbr.rel (%p1610) target = $region88
        $region87: #{tpu_custom_call.1} parent=83 // pred_region
          %s1613 = sand.u32 %s327, 1
          %s1614 = scalar_lea.sflag [#allocation3], %s1613
          %s1615 = sand.u32 %s327, 1
          %s1616 = smul.addr %s1615, 8
          %s1617 = scalar_lea.vmem [#allocation2], %s1616
          %1619 = dma.done %s1614, 128
        $region88: #{tpu_custom_call.1} parent=83 // pred_fallthru
          _
      $region84: #{tpu_custom_call.1} parent=5 // pred_fallthru
        _
    $region6: #{tpu_custom_call.1} parent=1 // loop_footer
      %s24 = sadd.s32 1, %s20
    $region7: #{tpu_custom_call.1} parent=1 // loop_footer_branch
      %19 = sbr.rel target = $region3
    $region8: #{tpu_custom_call.1} parent=1 // loop_exit
      _
    %1620 = vsyncpa [#allocation3], 1
    %s1621 = scalar_lea.sflag [#allocation3], 1
    %1622 = vsyncpa %s1621, 1

</llo_original>
